<compile_context>
chip_gen: v7x
topology: tpu7x:2x2x1
jax: 0.10.0
libtpu: 0.0.40
codegen_flags: <defaults>
</compile_context>

<pallas_src>
import jax
import jax.numpy as jnp
import numpy as np
from jax.experimental import pallas as pl
from jax.experimental.pallas import tpu as pltpu

DILATIONS = (1, 2, 3)
EPS = 1e-5


def _round_up(x, m):
    return ((x + m - 1) // m) * m


def _band_users(dilations, dmax):
    """Map row offset oi -> list of (dilation index, dilation, ki) using that band."""
    users = {}
    for di, d in enumerate(dilations):
        for ki in range(3):
            oi = dmax + (ki - 1) * d
            users.setdefault(oi, []).append((di, d, ki))
    return users


def _make_kernel(dilations, NB, H_out, W_out, Wp_r, dmax):
    D = len(dilations)
    users_by_band = _band_users(dilations, dmax)

    def kernel(w1_ref, sh1_ref, w2_ref, b2_ref, x_ref, o_ref):
        # x_ref: (NB, Hp_r, Wp_r) padded images;  o_ref: (NB, H_out, W_out)
        # params in SMEM: w1 (D, 9) with BN1 scale folded in, sh1 (D,), w2 (D,), b2 (1,)
        for nb in range(NB):
            accs = [jnp.zeros((H_out, W_out), jnp.float32) for _ in range(D)]
            for oi in sorted(users_by_band):
                # one lane-aligned band load, shared by every tap needing row offset oi
                band = x_ref[nb, oi:oi + H_out, :]              # (H_out, Wp_r)
                macs = []
                for (di, d, ki) in users_by_band[oi]:
                    for kj in range(3):
                        oj = dmax + (kj - 1) * d
                        macs.append((di, ki * 3 + kj, oj))
                # deduped column shifts on the XLU, then scalar-weighted MACs on the VPU
                shifted = {}
                for oj in sorted({m[2] for m in macs}):
                    if oj == 0:
                        shifted[oj] = band[:, :W_out]
                    else:
                        shifted[oj] = pltpu.roll(band, shift=Wp_r - oj, axis=1)[:, :W_out]
                for (di, widx, oj) in macs:
                    accs[di] = accs[di] + w1_ref[di, widx] * shifted[oj]
            # BN1 shift + ReLU, 1x1 conv across channels (BN2 folded), ReLU
            out = jnp.zeros((H_out, W_out), jnp.float32)
            for di in range(D):
                z = jnp.maximum(accs[di] + sh1_ref[di], 0.0)
                out = out + z * w2_ref[di]
            o_ref[nb, :, :] = jnp.maximum(out + b2_ref[0], 0.0)   # lane-dense store

    return kernel


def multi_scale_future_extraction(x_nchw, params, dilations=DILATIONS):
    N, C, H, W = x_nchw.shape
    assert C == 1
    D = len(dilations)
    dmax = max(dilations)

    # lane-dense output extents; input gets a dmax halo, rounded to (8, 128)
    H_out = _round_up(H, 8)
    W_out = _round_up(W, 128)
    Hp_r = _round_up(H_out + 2 * dmax, 8)
    Wp_r = _round_up(W_out + 2 * dmax, 128)

    # pack several (small) images per grid step
    NB = min(N, 8)
    n_blocks = -(-N // NB)
    N_pad = n_blocks * NB

    x = x_nchw[:, 0].astype(jnp.float32)
    x_pad = jnp.pad(
        x, ((0, N_pad - N), (dmax, Hp_r - H - dmax), (dmax, Wp_r - W - dmax)))

    # Fold conv1 bias + eval-mode BN1: scale folded into the 3x3 weights (exact),
    # per-channel shift stays as one add.
    s1 = params["bn1_gamma"] / jnp.sqrt(params["bn1_var"] + EPS)
    t1 = params["bn1_beta"] - params["bn1_mean"] * s1
    w1f = (params["w1"].reshape(D, 9) * s1[:, None]).astype(jnp.float32)
    sh1 = (params["b1"] * s1 + t1).astype(jnp.float32)

    # Fold conv2 bias + eval-mode BN2 into the 1x1 weights / bias.
    s2 = params["bn2_gamma"] / jnp.sqrt(params["bn2_var"] + EPS)
    t2 = params["bn2_beta"] - params["bn2_mean"] * s2
    w2f = (params["w2"] * s2).astype(jnp.float32)        # (D,)
    b2f = (params["b2"] * s2 + t2).astype(jnp.float32)   # (1,)

    kernel = _make_kernel(dilations, NB, H_out, W_out, Wp_r, dmax)
    smem_spec = pl.BlockSpec(memory_space=pltpu.MemorySpace.SMEM)

    # explicit scoped-VMEM budget: double-buffered in/out blocks + headroom
    block_bytes = NB * (Hp_r * Wp_r + H_out * W_out) * 4
    vmem_limit = int(min(48 * 1024 * 1024, max(2 * block_bytes + (2 << 20), 4 << 20)))

    out = pl.pallas_call(
        kernel,
        out_shape=jax.ShapeDtypeStruct((N_pad, H_out, W_out), jnp.float32),
        grid=(n_blocks,),
        in_specs=[smem_spec, smem_spec, smem_spec, smem_spec,
                  pl.BlockSpec((NB, Hp_r, Wp_r), lambda n: (n, 0, 0))],
        out_specs=pl.BlockSpec((NB, H_out, W_out), lambda n: (n, 0, 0)),
        compiler_params=pltpu.CompilerParams(
            dimension_semantics=("parallel",),
            vmem_limit_bytes=vmem_limit,
        ),
    )(w1f, sh1, w2f, b2f, x_pad)

    return out[:N, :H, :W][:, None, :, :]


def reference(x_nchw, params, dilations=DILATIONS):
    """Pure-JAX reference matching the PyTorch forward (eval-mode BN)."""
    res = []
    for i, d in enumerate(dilations):
        w = params["w1"][i].reshape(1, 1, 3, 3)
        y = jax.lax.conv_general_dilated(
            x_nchw, w, window_strides=(1, 1),
            padding=[(d, d), (d, d)], rhs_dilation=(d, d),
            dimension_numbers=("NCHW", "OIHW", "NCHW")) + params["b1"][i]
        res.append(y)
    r = jnp.concatenate(res, axis=1)  # (N, D, H, W)
    g = params["bn1_gamma"][None, :, None, None]
    b = params["bn1_beta"][None, :, None, None]
    m = params["bn1_mean"][None, :, None, None]
    v = params["bn1_var"][None, :, None, None]
    r = jax.nn.relu((r - m) / jnp.sqrt(v + EPS) * g + b)
    w2 = params["w2"].reshape(1, len(dilations), 1, 1)
    u = jax.lax.conv_general_dilated(
        r, w2, (1, 1), "VALID",
        dimension_numbers=("NCHW", "OIHW", "NCHW")) + params["b2"]
    u = jax.nn.relu((u - params["bn2_mean"]) / jnp.sqrt(params["bn2_var"] + EPS)
                    * params["bn2_gamma"] + params["bn2_beta"])
    return u


def init_params(key, dilations=DILATIONS):
    D = len(dilations)
    ks = jax.random.split(key, 8)
    return dict(
        w1=0.2 * jax.random.normal(ks[0], (D, 3, 3), jnp.float32),
        b1=0.1 * jax.random.normal(ks[1], (D,), jnp.float32),
        bn1_gamma=jnp.ones((D,), jnp.float32) + 0.1 * jax.random.normal(ks[2], (D,), jnp.float32),
        bn1_beta=0.1 * jax.random.normal(ks[3], (D,), jnp.float32),
        bn1_mean=0.05 * jax.random.normal(ks[4], (D,), jnp.float32),
        bn1_var=jnp.abs(jnp.ones((D,), jnp.float32) + 0.1 * jax.random.normal(ks[5], (D,), jnp.float32)),
        w2=0.3 * jax.random.normal(ks[6], (D,), jnp.float32),
        b2=jnp.array([0.05], jnp.float32),
        bn2_gamma=jnp.ones((1,), jnp.float32),
        bn2_beta=jnp.zeros((1,), jnp.float32),
        bn2_mean=jnp.zeros((1,), jnp.float32),
        bn2_var=jnp.ones((1,), jnp.float32),
    )


if __name__ == "__main__":
    key = jax.random.PRNGKey(0)
    k_param, k_x = jax.random.split(key)
    params = init_params(k_param)

    x = jax.random.normal(k_x, (2, 1, 16, 16), jnp.float32)   # NCHW, C=1

    out = multi_scale_future_extraction(x, params)
    out = jax.block_until_ready(out)

    ref = jax.block_until_ready(reference(x, params))
    np.testing.assert_allclose(np.asarray(out), np.asarray(ref), rtol=1e-4, atol=1e-5)
    assert out.shape == (2, 1, 16, 16)

    print("KERNEL_OK")
</pallas_src>

<mosaic_0001>
module attributes {stable_mosaic.version = 11 : i64} {
  func.func @kernel(%arg0: i32, %arg1: memref<3x9xf32, #tpu.memory_space<smem>>, %arg2: memref<3xf32, #tpu.memory_space<smem>>, %arg3: memref<3xf32, #tpu.memory_space<smem>>, %arg4: memref<1xf32, #tpu.memory_space<smem>>, %arg5: memref<2x24x256xf32, #tpu.memory_space<vmem>>, %arg6: memref<2x16x128xf32, #tpu.memory_space<vmem>>) attributes {dimension_semantics = [#tpu.dimension_semantics<parallel>], iteration_bounds = array<i64: 1>, scalar_prefetch = 0 : i64, scratch_operands = 0 : i64, tpu.core_type = #tpu.core_type<tc>, window_params = [{transform_indices = @transform_0, window_bounds = array<i64: 3, 9>}, {transform_indices = @transform_1, window_bounds = array<i64: 3>}, {transform_indices = @transform_2, window_bounds = array<i64: 3>}, {transform_indices = @transform_3, window_bounds = array<i64: 1>}, {transform_indices = @transform_4, window_bounds = array<i64: 2, 24, 256>}, {transform_indices = @transform_5, window_bounds = array<i64: 2, 16, 128>}]} {
    %cst = arith.constant 0.000000e+00 : f32
    %0 = vector.broadcast %cst : f32 to vector<16x128xf32>
    %cst_0 = arith.constant 0.000000e+00 : f32
    %1 = vector.broadcast %cst_0 : f32 to vector<16x128xf32>
    %cst_1 = arith.constant 0.000000e+00 : f32
    %2 = vector.broadcast %cst_1 : f32 to vector<16x128xf32>
    %c0 = arith.constant 0 : index
    %c0_2 = arith.constant 0 : index
    %c0_3 = arith.constant 0 : index
    %3 = vector.load %arg5[%c0, %c0_2, %c0_3] : memref<2x24x256xf32, #tpu.memory_space<vmem>>, vector<1x16x256xf32>
    %4 = vector.shape_cast %3 : vector<1x16x256xf32> to vector<16x256xf32>
    %5 = vector.extract_strided_slice %4 {offsets = [0, 0], sizes = [16, 128], strides = [1, 1]} : vector<16x256xf32> to vector<16x128xf32>
    %c253_i32 = arith.constant 253 : i32
    %6 = tpu.dynamic_rotate %4 by %c253_i32 dim 1 : vector<16x256xf32>, i32 -> vector<16x256xf32>
    %7 = vector.extract_strided_slice %6 {offsets = [0, 0], sizes = [16, 128], strides = [1, 1]} : vector<16x256xf32> to vector<16x128xf32>
    %c250_i32 = arith.constant 250 : i32
    %8 = tpu.dynamic_rotate %4 by %c250_i32 dim 1 : vector<16x256xf32>, i32 -> vector<16x256xf32>
    %9 = vector.extract_strided_slice %8 {offsets = [0, 0], sizes = [16, 128], strides = [1, 1]} : vector<16x256xf32> to vector<16x128xf32>
    %c2 = arith.constant 2 : index
    %c0_4 = arith.constant 0 : index
    %10 = memref.load %arg1[%c2, %c0_4] : memref<3x9xf32, #tpu.memory_space<smem>>
    %11 = vector.broadcast %10 : f32 to vector<16x128xf32>
    %12 = arith.mulf %11, %5 : vector<16x128xf32>
    %13 = arith.addf %2, %12 : vector<16x128xf32>
    %c2_5 = arith.constant 2 : index
    %c1 = arith.constant 1 : index
    %14 = memref.load %arg1[%c2_5, %c1] : memref<3x9xf32, #tpu.memory_space<smem>>
    %15 = vector.broadcast %14 : f32 to vector<16x128xf32>
    %16 = arith.mulf %15, %7 : vector<16x128xf32>
    %17 = arith.addf %13, %16 : vector<16x128xf32>
    %c2_6 = arith.constant 2 : index
    %c2_7 = arith.constant 2 : index
    %18 = memref.load %arg1[%c2_6, %c2_7] : memref<3x9xf32, #tpu.memory_space<smem>>
    %19 = vector.broadcast %18 : f32 to vector<16x128xf32>
    %20 = arith.mulf %19, %9 : vector<16x128xf32>
    %21 = arith.addf %17, %20 : vector<16x128xf32>
    %c0_8 = arith.constant 0 : index
    %c1_9 = arith.constant 1 : index
    %c0_10 = arith.constant 0 : index
    %22 = vector.load %arg5[%c0_8, %c1_9, %c0_10] : memref<2x24x256xf32, #tpu.memory_space<vmem>>, vector<1x16x256xf32>
    %23 = vector.shape_cast %22 : vector<1x16x256xf32> to vector<16x256xf32>
    %c255_i32 = arith.constant 255 : i32
    %24 = tpu.dynamic_rotate %23 by %c255_i32 dim 1 : vector<16x256xf32>, i32 -> vector<16x256xf32>
    %25 = vector.extract_strided_slice %24 {offsets = [0, 0], sizes = [16, 128], strides = [1, 1]} : vector<16x256xf32> to vector<16x128xf32>
    %c253_i32_11 = arith.constant 253 : i32
    %26 = tpu.dynamic_rotate %23 by %c253_i32_11 dim 1 : vector<16x256xf32>, i32 -> vector<16x256xf32>
    %27 = vector.extract_strided_slice %26 {offsets = [0, 0], sizes = [16, 128], strides = [1, 1]} : vector<16x256xf32> to vector<16x128xf32>
    %c251_i32 = arith.constant 251 : i32
    %28 = tpu.dynamic_rotate %23 by %c251_i32 dim 1 : vector<16x256xf32>, i32 -> vector<16x256xf32>
    %29 = vector.extract_strided_slice %28 {offsets = [0, 0], sizes = [16, 128], strides = [1, 1]} : vector<16x256xf32> to vector<16x128xf32>
    %c1_12 = arith.constant 1 : index
    %c0_13 = arith.constant 0 : index
    %30 = memref.load %arg1[%c1_12, %c0_13] : memref<3x9xf32, #tpu.memory_space<smem>>
    %31 = vector.broadcast %30 : f32 to vector<16x128xf32>
    %32 = arith.mulf %31, %25 : vector<16x128xf32>
    %33 = arith.addf %1, %32 : vector<16x128xf32>
    %c1_14 = arith.constant 1 : index
    %c1_15 = arith.constant 1 : index
    %34 = memref.load %arg1[%c1_14, %c1_15] : memref<3x9xf32, #tpu.memory_space<smem>>
    %35 = vector.broadcast %34 : f32 to vector<16x128xf32>
    %36 = arith.mulf %35, %27 : vector<16x128xf32>
    %37 = arith.addf %33, %36 : vector<16x128xf32>
    %c1_16 = arith.constant 1 : index
    %c2_17 = arith.constant 2 : index
    %38 = memref.load %arg1[%c1_16, %c2_17] : memref<3x9xf32, #tpu.memory_space<smem>>
    %39 = vector.broadcast %38 : f32 to vector<16x128xf32>
    %40 = arith.mulf %39, %29 : vector<16x128xf32>
    %41 = arith.addf %37, %40 : vector<16x128xf32>
    %c0_18 = arith.constant 0 : index
    %c2_19 = arith.constant 2 : index
    %c0_20 = arith.constant 0 : index
    %42 = vector.load %arg5[%c0_18, %c2_19, %c0_20] : memref<2x24x256xf32, #tpu.memory_space<vmem>>, vector<1x16x256xf32>
    %43 = vector.shape_cast %42 : vector<1x16x256xf32> to vector<16x256xf32>
    %c254_i32 = arith.constant 254 : i32
    %44 = tpu.dynamic_rotate %43 by %c254_i32 dim 1 : vector<16x256xf32>, i32 -> vector<16x256xf32>
    %45 = vector.extract_strided_slice %44 {offsets = [0, 0], sizes = [16, 128], strides = [1, 1]} : vector<16x256xf32> to vector<16x128xf32>
    %c253_i32_21 = arith.constant 253 : i32
    %46 = tpu.dynamic_rotate %43 by %c253_i32_21 dim 1 : vector<16x256xf32>, i32 -> vector<16x256xf32>
    %47 = vector.extract_strided_slice %46 {offsets = [0, 0], sizes = [16, 128], strides = [1, 1]} : vector<16x256xf32> to vector<16x128xf32>
    %c252_i32 = arith.constant 252 : i32
    %48 = tpu.dynamic_rotate %43 by %c252_i32 dim 1 : vector<16x256xf32>, i32 -> vector<16x256xf32>
    %49 = vector.extract_strided_slice %48 {offsets = [0, 0], sizes = [16, 128], strides = [1, 1]} : vector<16x256xf32> to vector<16x128xf32>
    %c0_22 = arith.constant 0 : index
    %c0_23 = arith.constant 0 : index
    %50 = memref.load %arg1[%c0_22, %c0_23] : memref<3x9xf32, #tpu.memory_space<smem>>
    %51 = vector.broadcast %50 : f32 to vector<16x128xf32>
    %52 = arith.mulf %51, %45 : vector<16x128xf32>
    %53 = arith.addf %0, %52 : vector<16x128xf32>
    %c0_24 = arith.constant 0 : index
    %c1_25 = arith.constant 1 : index
    %54 = memref.load %arg1[%c0_24, %c1_25] : memref<3x9xf32, #tpu.memory_space<smem>>
    %55 = vector.broadcast %54 : f32 to vector<16x128xf32>
    %56 = arith.mulf %55, %47 : vector<16x128xf32>
    %57 = arith.addf %53, %56 : vector<16x128xf32>
    %c0_26 = arith.constant 0 : index
    %c2_27 = arith.constant 2 : index
    %58 = memref.load %arg1[%c0_26, %c2_27] : memref<3x9xf32, #tpu.memory_space<smem>>
    %59 = vector.broadcast %58 : f32 to vector<16x128xf32>
    %60 = arith.mulf %59, %49 : vector<16x128xf32>
    %61 = arith.addf %57, %60 : vector<16x128xf32>
    %c0_28 = arith.constant 0 : index
    %c3 = arith.constant 3 : index
    %c0_29 = arith.constant 0 : index
    %62 = vector.load %arg5[%c0_28, %c3, %c0_29] : memref<2x24x256xf32, #tpu.memory_space<vmem>>, vector<1x16x256xf32>
    %63 = vector.shape_cast %62 : vector<1x16x256xf32> to vector<16x256xf32>
    %64 = vector.extract_strided_slice %63 {offsets = [0, 0], sizes = [16, 128], strides = [1, 1]} : vector<16x256xf32> to vector<16x128xf32>
    %c255_i32_30 = arith.constant 255 : i32
    %65 = tpu.dynamic_rotate %63 by %c255_i32_30 dim 1 : vector<16x256xf32>, i32 -> vector<16x256xf32>
    %66 = vector.extract_strided_slice %65 {offsets = [0, 0], sizes = [16, 128], strides = [1, 1]} : vector<16x256xf32> to vector<16x128xf32>
    %c254_i32_31 = arith.constant 254 : i32
    %67 = tpu.dynamic_rotate %63 by %c254_i32_31 dim 1 : vector<16x256xf32>, i32 -> vector<16x256xf32>
    %68 = vector.extract_strided_slice %67 {offsets = [0, 0], sizes = [16, 128], strides = [1, 1]} : vector<16x256xf32> to vector<16x128xf32>
    %c253_i32_32 = arith.constant 253 : i32
    %69 = tpu.dynamic_rotate %63 by %c253_i32_32 dim 1 : vector<16x256xf32>, i32 -> vector<16x256xf32>
    %70 = vector.extract_strided_slice %69 {offsets = [0, 0], sizes = [16, 128], strides = [1, 1]} : vector<16x256xf32> to vector<16x128xf32>
    %c252_i32_33 = arith.constant 252 : i32
    %71 = tpu.dynamic_rotate %63 by %c252_i32_33 dim 1 : vector<16x256xf32>, i32 -> vector<16x256xf32>
    %72 = vector.extract_strided_slice %71 {offsets = [0, 0], sizes = [16, 128], strides = [1, 1]} : vector<16x256xf32> to vector<16x128xf32>
    %c251_i32_34 = arith.constant 251 : i32
    %73 = tpu.dynamic_rotate %63 by %c251_i32_34 dim 1 : vector<16x256xf32>, i32 -> vector<16x256xf32>
    %74 = vector.extract_strided_slice %73 {offsets = [0, 0], sizes = [16, 128], strides = [1, 1]} : vector<16x256xf32> to vector<16x128xf32>
    %c250_i32_35 = arith.constant 250 : i32
    %75 = tpu.dynamic_rotate %63 by %c250_i32_35 dim 1 : vector<16x256xf32>, i32 -> vector<16x256xf32>
    %76 = vector.extract_strided_slice %75 {offsets = [0, 0], sizes = [16, 128], strides = [1, 1]} : vector<16x256xf32> to vector<16x128xf32>
    %c0_36 = arith.constant 0 : index
    %c3_37 = arith.constant 3 : index
    %77 = memref.load %arg1[%c0_36, %c3_37] : memref<3x9xf32, #tpu.memory_space<smem>>
    %78 = vector.broadcast %77 : f32 to vector<16x128xf32>
    %79 = arith.mulf %78, %68 : vector<16x128xf32>
    %80 = arith.addf %61, %79 : vector<16x128xf32>
    %c0_38 = arith.constant 0 : index
    %c4 = arith.constant 4 : index
    %81 = memref.load %arg1[%c0_38, %c4] : memref<3x9xf32, #tpu.memory_space<smem>>
    %82 = vector.broadcast %81 : f32 to vector<16x128xf32>
    %83 = arith.mulf %82, %70 : vector<16x128xf32>
    %84 = arith.addf %80, %83 : vector<16x128xf32>
    %c0_39 = arith.constant 0 : index
    %c5 = arith.constant 5 : index
    %85 = memref.load %arg1[%c0_39, %c5] : memref<3x9xf32, #tpu.memory_space<smem>>
    %86 = vector.broadcast %85 : f32 to vector<16x128xf32>
    %87 = arith.mulf %86, %72 : vector<16x128xf32>
    %88 = arith.addf %84, %87 : vector<16x128xf32>
    %c1_40 = arith.constant 1 : index
    %c3_41 = arith.constant 3 : index
    %89 = memref.load %arg1[%c1_40, %c3_41] : memref<3x9xf32, #tpu.memory_space<smem>>
    %90 = vector.broadcast %89 : f32 to vector<16x128xf32>
    %91 = arith.mulf %90, %66 : vector<16x128xf32>
    %92 = arith.addf %41, %91 : vector<16x128xf32>
    %c1_42 = arith.constant 1 : index
    %c4_43 = arith.constant 4 : index
    %93 = memref.load %arg1[%c1_42, %c4_43] : memref<3x9xf32, #tpu.memory_space<smem>>
    %94 = vector.broadcast %93 : f32 to vector<16x128xf32>
    %95 = arith.mulf %94, %70 : vector<16x128xf32>
    %96 = arith.addf %92, %95 : vector<16x128xf32>
    %c1_44 = arith.constant 1 : index
    %c5_45 = arith.constant 5 : index
    %97 = memref.load %arg1[%c1_44, %c5_45] : memref<3x9xf32, #tpu.memory_space<smem>>
    %98 = vector.broadcast %97 : f32 to vector<16x128xf32>
    %99 = arith.mulf %98, %74 : vector<16x128xf32>
    %100 = arith.addf %96, %99 : vector<16x128xf32>
    %c2_46 = arith.constant 2 : index
    %c3_47 = arith.constant 3 : index
    %101 = memref.load %arg1[%c2_46, %c3_47] : memref<3x9xf32, #tpu.memory_space<smem>>
    %102 = vector.broadcast %101 : f32 to vector<16x128xf32>
    %103 = arith.mulf %102, %64 : vector<16x128xf32>
    %104 = arith.addf %21, %103 : vector<16x128xf32>
    %c2_48 = arith.constant 2 : index
    %c4_49 = arith.constant 4 : index
    %105 = memref.load %arg1[%c2_48, %c4_49] : memref<3x9xf32, #tpu.memory_space<smem>>
    %106 = vector.broadcast %105 : f32 to vector<16x128xf32>
    %107 = arith.mulf %106, %70 : vector<16x128xf32>
    %108 = arith.addf %104, %107 : vector<16x128xf32>
    %c2_50 = arith.constant 2 : index
    %c5_51 = arith.constant 5 : index
    %109 = memref.load %arg1[%c2_50, %c5_51] : memref<3x9xf32, #tpu.memory_space<smem>>
    %110 = vector.broadcast %109 : f32 to vector<16x128xf32>
    %111 = arith.mulf %110, %76 : vector<16x128xf32>
    %112 = arith.addf %108, %111 : vector<16x128xf32>
    %c0_52 = arith.constant 0 : index
    %c4_53 = arith.constant 4 : index
    %c0_54 = arith.constant 0 : index
    %113 = vector.load %arg5[%c0_52, %c4_53, %c0_54] : memref<2x24x256xf32, #tpu.memory_space<vmem>>, vector<1x16x256xf32>
    %114 = vector.shape_cast %113 : vector<1x16x256xf32> to vector<16x256xf32>
    %c254_i32_55 = arith.constant 254 : i32
    %115 = tpu.dynamic_rotate %114 by %c254_i32_55 dim 1 : vector<16x256xf32>, i32 -> vector<16x256xf32>
    %116 = vector.extract_strided_slice %115 {offsets = [0, 0], sizes = [16, 128], strides = [1, 1]} : vector<16x256xf32> to vector<16x128xf32>
    %c253_i32_56 = arith.constant 253 : i32
    %117 = tpu.dynamic_rotate %114 by %c253_i32_56 dim 1 : vector<16x256xf32>, i32 -> vector<16x256xf32>
    %118 = vector.extract_strided_slice %117 {offsets = [0, 0], sizes = [16, 128], strides = [1, 1]} : vector<16x256xf32> to vector<16x128xf32>
    %c252_i32_57 = arith.constant 252 : i32
    %119 = tpu.dynamic_rotate %114 by %c252_i32_57 dim 1 : vector<16x256xf32>, i32 -> vector<16x256xf32>
    %120 = vector.extract_strided_slice %119 {offsets = [0, 0], sizes = [16, 128], strides = [1, 1]} : vector<16x256xf32> to vector<16x128xf32>
    %c0_58 = arith.constant 0 : index
    %c6 = arith.constant 6 : index
    %121 = memref.load %arg1[%c0_58, %c6] : memref<3x9xf32, #tpu.memory_space<smem>>
    %122 = vector.broadcast %121 : f32 to vector<16x128xf32>
    %123 = arith.mulf %122, %116 : vector<16x128xf32>
    %124 = arith.addf %88, %123 : vector<16x128xf32>
    %c0_59 = arith.constant 0 : index
    %c7 = arith.constant 7 : index
    %125 = memref.load %arg1[%c0_59, %c7] : memref<3x9xf32, #tpu.memory_space<smem>>
    %126 = vector.broadcast %125 : f32 to vector<16x128xf32>
    %127 = arith.mulf %126, %118 : vector<16x128xf32>
    %128 = arith.addf %124, %127 : vector<16x128xf32>
    %c0_60 = arith.constant 0 : index
    %c8 = arith.constant 8 : index
    %129 = memref.load %arg1[%c0_60, %c8] : memref<3x9xf32, #tpu.memory_space<smem>>
    %130 = vector.broadcast %129 : f32 to vector<16x128xf32>
    %131 = arith.mulf %130, %120 : vector<16x128xf32>
    %132 = arith.addf %128, %131 : vector<16x128xf32>
    %c0_61 = arith.constant 0 : index
    %c5_62 = arith.constant 5 : index
    %c0_63 = arith.constant 0 : index
    %133 = vector.load %arg5[%c0_61, %c5_62, %c0_63] : memref<2x24x256xf32, #tpu.memory_space<vmem>>, vector<1x16x256xf32>
    %134 = vector.shape_cast %133 : vector<1x16x256xf32> to vector<16x256xf32>
    %c255_i32_64 = arith.constant 255 : i32
    %135 = tpu.dynamic_rotate %134 by %c255_i32_64 dim 1 : vector<16x256xf32>, i32 -> vector<16x256xf32>
    %136 = vector.extract_strided_slice %135 {offsets = [0, 0], sizes = [16, 128], strides = [1, 1]} : vector<16x256xf32> to vector<16x128xf32>
    %c253_i32_65 = arith.constant 253 : i32
    %137 = tpu.dynamic_rotate %134 by %c253_i32_65 dim 1 : vector<16x256xf32>, i32 -> vector<16x256xf32>
    %138 = vector.extract_strided_slice %137 {offsets = [0, 0], sizes = [16, 128], strides = [1, 1]} : vector<16x256xf32> to vector<16x128xf32>
    %c251_i32_66 = arith.constant 251 : i32
    %139 = tpu.dynamic_rotate %134 by %c251_i32_66 dim 1 : vector<16x256xf32>, i32 -> vector<16x256xf32>
    %140 = vector.extract_strided_slice %139 {offsets = [0, 0], sizes = [16, 128], strides = [1, 1]} : vector<16x256xf32> to vector<16x128xf32>
    %c1_67 = arith.constant 1 : index
    %c6_68 = arith.constant 6 : index
    %141 = memref.load %arg1[%c1_67, %c6_68] : memref<3x9xf32, #tpu.memory_space<smem>>
    %142 = vector.broadcast %141 : f32 to vector<16x128xf32>
    %143 = arith.mulf %142, %136 : vector<16x128xf32>
    %144 = arith.addf %100, %143 : vector<16x128xf32>
    %c1_69 = arith.constant 1 : index
    %c7_70 = arith.constant 7 : index
    %145 = memref.load %arg1[%c1_69, %c7_70] : memref<3x9xf32, #tpu.memory_space<smem>>
    %146 = vector.broadcast %145 : f32 to vector<16x128xf32>
    %147 = arith.mulf %146, %138 : vector<16x128xf32>
    %148 = arith.addf %144, %147 : vector<16x128xf32>
    %c1_71 = arith.constant 1 : index
    %c8_72 = arith.constant 8 : index
    %149 = memref.load %arg1[%c1_71, %c8_72] : memref<3x9xf32, #tpu.memory_space<smem>>
    %150 = vector.broadcast %149 : f32 to vector<16x128xf32>
    %151 = arith.mulf %150, %140 : vector<16x128xf32>
    %152 = arith.addf %148, %151 : vector<16x128xf32>
    %c0_73 = arith.constant 0 : index
    %c6_74 = arith.constant 6 : index
    %c0_75 = arith.constant 0 : index
    %153 = vector.load %arg5[%c0_73, %c6_74, %c0_75] : memref<2x24x256xf32, #tpu.memory_space<vmem>>, vector<1x16x256xf32>
    %154 = vector.shape_cast %153 : vector<1x16x256xf32> to vector<16x256xf32>
    %155 = vector.extract_strided_slice %154 {offsets = [0, 0], sizes = [16, 128], strides = [1, 1]} : vector<16x256xf32> to vector<16x128xf32>
    %c253_i32_76 = arith.constant 253 : i32
    %156 = tpu.dynamic_rotate %154 by %c253_i32_76 dim 1 : vector<16x256xf32>, i32 -> vector<16x256xf32>
    %157 = vector.extract_strided_slice %156 {offsets = [0, 0], sizes = [16, 128], strides = [1, 1]} : vector<16x256xf32> to vector<16x128xf32>
    %c250_i32_77 = arith.constant 250 : i32
    %158 = tpu.dynamic_rotate %154 by %c250_i32_77 dim 1 : vector<16x256xf32>, i32 -> vector<16x256xf32>
    %159 = vector.extract_strided_slice %158 {offsets = [0, 0], sizes = [16, 128], strides = [1, 1]} : vector<16x256xf32> to vector<16x128xf32>
    %c2_78 = arith.constant 2 : index
    %c6_79 = arith.constant 6 : index
    %160 = memref.load %arg1[%c2_78, %c6_79] : memref<3x9xf32, #tpu.memory_space<smem>>
    %161 = vector.broadcast %160 : f32 to vector<16x128xf32>
    %162 = arith.mulf %161, %155 : vector<16x128xf32>
    %163 = arith.addf %112, %162 : vector<16x128xf32>
    %c2_80 = arith.constant 2 : index
    %c7_81 = arith.constant 7 : index
    %164 = memref.load %arg1[%c2_80, %c7_81] : memref<3x9xf32, #tpu.memory_space<smem>>
    %165 = vector.broadcast %164 : f32 to vector<16x128xf32>
    %166 = arith.mulf %165, %157 : vector<16x128xf32>
    %167 = arith.addf %163, %166 : vector<16x128xf32>
    %c2_82 = arith.constant 2 : index
    %c8_83 = arith.constant 8 : index
    %168 = memref.load %arg1[%c2_82, %c8_83] : memref<3x9xf32, #tpu.memory_space<smem>>
    %169 = vector.broadcast %168 : f32 to vector<16x128xf32>
    %170 = arith.mulf %169, %159 : vector<16x128xf32>
    %171 = arith.addf %167, %170 : vector<16x128xf32>
    %cst_84 = arith.constant 0.000000e+00 : f32
    %172 = vector.broadcast %cst_84 : f32 to vector<16x128xf32>
    %c0_85 = arith.constant 0 : index
    %173 = memref.load %arg2[%c0_85] : memref<3xf32, #tpu.memory_space<smem>>
    %174 = vector.broadcast %173 : f32 to vector<16x128xf32>
    %175 = arith.addf %132, %174 : vector<16x128xf32>
    %cst_86 = arith.constant 0.000000e+00 : f32
    %176 = vector.broadcast %cst_86 : f32 to vector<16x128xf32>
    %177 = arith.maximumf %175, %176 : vector<16x128xf32>
    %c0_87 = arith.constant 0 : index
    %178 = memref.load %arg3[%c0_87] : memref<3xf32, #tpu.memory_space<smem>>
    %179 = vector.broadcast %178 : f32 to vector<16x128xf32>
    %180 = arith.mulf %177, %179 : vector<16x128xf32>
    %181 = arith.addf %172, %180 : vector<16x128xf32>
    %c1_88 = arith.constant 1 : index
    %182 = memref.load %arg2[%c1_88] : memref<3xf32, #tpu.memory_space<smem>>
    %183 = vector.broadcast %182 : f32 to vector<16x128xf32>
    %184 = arith.addf %152, %183 : vector<16x128xf32>
    %cst_89 = arith.constant 0.000000e+00 : f32
    %185 = vector.broadcast %cst_89 : f32 to vector<16x128xf32>
    %186 = arith.maximumf %184, %185 : vector<16x128xf32>
    %c1_90 = arith.constant 1 : index
    %187 = memref.load %arg3[%c1_90] : memref<3xf32, #tpu.memory_space<smem>>
    %188 = vector.broadcast %187 : f32 to vector<16x128xf32>
    %189 = arith.mulf %186, %188 : vector<16x128xf32>
    %190 = arith.addf %181, %189 : vector<16x128xf32>
    %c2_91 = arith.constant 2 : index
    %191 = memref.load %arg2[%c2_91] : memref<3xf32, #tpu.memory_space<smem>>
    %192 = vector.broadcast %191 : f32 to vector<16x128xf32>
    %193 = arith.addf %171, %192 : vector<16x128xf32>
    %cst_92 = arith.constant 0.000000e+00 : f32
    %194 = vector.broadcast %cst_92 : f32 to vector<16x128xf32>
    %195 = arith.maximumf %193, %194 : vector<16x128xf32>
    %c2_93 = arith.constant 2 : index
    %196 = memref.load %arg3[%c2_93] : memref<3xf32, #tpu.memory_space<smem>>
    %197 = vector.broadcast %196 : f32 to vector<16x128xf32>
    %198 = arith.mulf %195, %197 : vector<16x128xf32>
    %199 = arith.addf %190, %198 : vector<16x128xf32>
    %c0_94 = arith.constant 0 : index
    %200 = memref.load %arg4[%c0_94] : memref<1xf32, #tpu.memory_space<smem>>
    %201 = vector.broadcast %200 : f32 to vector<16x128xf32>
    %202 = arith.addf %199, %201 : vector<16x128xf32>
    %cst_95 = arith.constant 0.000000e+00 : f32
    %203 = vector.broadcast %cst_95 : f32 to vector<16x128xf32>
    %204 = arith.maximumf %202, %203 : vector<16x128xf32>
    %c0_96 = arith.constant 0 : index
    %c0_97 = arith.constant 0 : index
    %c0_98 = arith.constant 0 : index
    %205 = vector.load %arg6[%c0_96, %c0_97, %c0_98] : memref<2x16x128xf32, #tpu.memory_space<vmem>>, vector<1x16x128xf32>
    %206 = vector.shape_cast %205 : vector<1x16x128xf32> to vector<16x128xf32>
    %207 = vector.shape_cast %204 : vector<16x128xf32> to vector<1x16x128xf32>
    tpu.vector_store %arg6[%c0_96, %c0_97, %c0_98], %207 {strides = array<i32>} : memref<2x16x128xf32, #tpu.memory_space<vmem>>, vector<1x16x128xf32>,
    %cst_99 = arith.constant 0.000000e+00 : f32
    %208 = vector.broadcast %cst_99 : f32 to vector<16x128xf32>
    %cst_100 = arith.constant 0.000000e+00 : f32
    %209 = vector.broadcast %cst_100 : f32 to vector<16x128xf32>
    %cst_101 = arith.constant 0.000000e+00 : f32
    %210 = vector.broadcast %cst_101 : f32 to vector<16x128xf32>
    %c1_102 = arith.constant 1 : index
    %c0_103 = arith.constant 0 : index
    %c0_104 = arith.constant 0 : index
    %211 = vector.load %arg5[%c1_102, %c0_103, %c0_104] : memref<2x24x256xf32, #tpu.memory_space<vmem>>, vector<1x16x256xf32>
    %212 = vector.shape_cast %211 : vector<1x16x256xf32> to vector<16x256xf32>
    %213 = vector.extract_strided_slice %212 {offsets = [0, 0], sizes = [16, 128], strides = [1, 1]} : vector<16x256xf32> to vector<16x128xf32>
    %c253_i32_105 = arith.constant 253 : i32
    %214 = tpu.dynamic_rotate %212 by %c253_i32_105 dim 1 : vector<16x256xf32>, i32 -> vector<16x256xf32>
    %215 = vector.extract_strided_slice %214 {offsets = [0, 0], sizes = [16, 128], strides = [1, 1]} : vector<16x256xf32> to vector<16x128xf32>
    %c250_i32_106 = arith.constant 250 : i32
    %216 = tpu.dynamic_rotate %212 by %c250_i32_106 dim 1 : vector<16x256xf32>, i32 -> vector<16x256xf32>
    %217 = vector.extract_strided_slice %216 {offsets = [0, 0], sizes = [16, 128], strides = [1, 1]} : vector<16x256xf32> to vector<16x128xf32>
    %c2_107 = arith.constant 2 : index
    %c0_108 = arith.constant 0 : index
    %218 = memref.load %arg1[%c2_107, %c0_108] : memref<3x9xf32, #tpu.memory_space<smem>>
    %219 = vector.broadcast %218 : f32 to vector<16x128xf32>
    %220 = arith.mulf %219, %213 : vector<16x128xf32>
    %221 = arith.addf %210, %220 : vector<16x128xf32>
    %c2_109 = arith.constant 2 : index
    %c1_110 = arith.constant 1 : index
    %222 = memref.load %arg1[%c2_109, %c1_110] : memref<3x9xf32, #tpu.memory_space<smem>>
    %223 = vector.broadcast %222 : f32 to vector<16x128xf32>
    %224 = arith.mulf %223, %215 : vector<16x128xf32>
    %225 = arith.addf %221, %224 : vector<16x128xf32>
    %c2_111 = arith.constant 2 : index
    %c2_112 = arith.constant 2 : index
    %226 = memref.load %arg1[%c2_111, %c2_112] : memref<3x9xf32, #tpu.memory_space<smem>>
    %227 = vector.broadcast %226 : f32 to vector<16x128xf32>
    %228 = arith.mulf %227, %217 : vector<16x128xf32>
    %229 = arith.addf %225, %228 : vector<16x128xf32>
    %c1_113 = arith.constant 1 : index
    %c1_114 = arith.constant 1 : index
    %c0_115 = arith.constant 0 : index
    %230 = vector.load %arg5[%c1_113, %c1_114, %c0_115] : memref<2x24x256xf32, #tpu.memory_space<vmem>>, vector<1x16x256xf32>
    %231 = vector.shape_cast %230 : vector<1x16x256xf32> to vector<16x256xf32>
    %c255_i32_116 = arith.constant 255 : i32
    %232 = tpu.dynamic_rotate %231 by %c255_i32_116 dim 1 : vector<16x256xf32>, i32 -> vector<16x256xf32>
    %233 = vector.extract_strided_slice %232 {offsets = [0, 0], sizes = [16, 128], strides = [1, 1]} : vector<16x256xf32> to vector<16x128xf32>
    %c253_i32_117 = arith.constant 253 : i32
    %234 = tpu.dynamic_rotate %231 by %c253_i32_117 dim 1 : vector<16x256xf32>, i32 -> vector<16x256xf32>
    %235 = vector.extract_strided_slice %234 {offsets = [0, 0], sizes = [16, 128], strides = [1, 1]} : vector<16x256xf32> to vector<16x128xf32>
    %c251_i32_118 = arith.constant 251 : i32
    %236 = tpu.dynamic_rotate %231 by %c251_i32_118 dim 1 : vector<16x256xf32>, i32 -> vector<16x256xf32>
    %237 = vector.extract_strided_slice %236 {offsets = [0, 0], sizes = [16, 128], strides = [1, 1]} : vector<16x256xf32> to vector<16x128xf32>
    %c1_119 = arith.constant 1 : index
    %c0_120 = arith.constant 0 : index
    %238 = memref.load %arg1[%c1_119, %c0_120] : memref<3x9xf32, #tpu.memory_space<smem>>
    %239 = vector.broadcast %238 : f32 to vector<16x128xf32>
    %240 = arith.mulf %239, %233 : vector<16x128xf32>
    %241 = arith.addf %209, %240 : vector<16x128xf32>
    %c1_121 = arith.constant 1 : index
    %c1_122 = arith.constant 1 : index
    %242 = memref.load %arg1[%c1_121, %c1_122] : memref<3x9xf32, #tpu.memory_space<smem>>
    %243 = vector.broadcast %242 : f32 to vector<16x128xf32>
    %244 = arith.mulf %243, %235 : vector<16x128xf32>
    %245 = arith.addf %241, %244 : vector<16x128xf32>
    %c1_123 = arith.constant 1 : index
    %c2_124 = arith.constant 2 : index
    %246 = memref.load %arg1[%c1_123, %c2_124] : memref<3x9xf32, #tpu.memory_space<smem>>
    %247 = vector.broadcast %246 : f32 to vector<16x128xf32>
    %248 = arith.mulf %247, %237 : vector<16x128xf32>
    %249 = arith.addf %245, %248 : vector<16x128xf32>
    %c1_125 = arith.constant 1 : index
    %c2_126 = arith.constant 2 : index
    %c0_127 = arith.constant 0 : index
    %250 = vector.load %arg5[%c1_125, %c2_126, %c0_127] : memref<2x24x256xf32, #tpu.memory_space<vmem>>, vector<1x16x256xf32>
    %251 = vector.shape_cast %250 : vector<1x16x256xf32> to vector<16x256xf32>
    %c254_i32_128 = arith.constant 254 : i32
    %252 = tpu.dynamic_rotate %251 by %c254_i32_128 dim 1 : vector<16x256xf32>, i32 -> vector<16x256xf32>
    %253 = vector.extract_strided_slice %252 {offsets = [0, 0], sizes = [16, 128], strides = [1, 1]} : vector<16x256xf32> to vector<16x128xf32>
    %c253_i32_129 = arith.constant 253 : i32
    %254 = tpu.dynamic_rotate %251 by %c253_i32_129 dim 1 : vector<16x256xf32>, i32 -> vector<16x256xf32>
    %255 = vector.extract_strided_slice %254 {offsets = [0, 0], sizes = [16, 128], strides = [1, 1]} : vector<16x256xf32> to vector<16x128xf32>
    %c252_i32_130 = arith.constant 252 : i32
    %256 = tpu.dynamic_rotate %251 by %c252_i32_130 dim 1 : vector<16x256xf32>, i32 -> vector<16x256xf32>
    %257 = vector.extract_strided_slice %256 {offsets = [0, 0], sizes = [16, 128], strides = [1, 1]} : vector<16x256xf32> to vector<16x128xf32>
    %c0_131 = arith.constant 0 : index
    %c0_132 = arith.constant 0 : index
    %258 = memref.load %arg1[%c0_131, %c0_132] : memref<3x9xf32, #tpu.memory_space<smem>>
    %259 = vector.broadcast %258 : f32 to vector<16x128xf32>
    %260 = arith.mulf %259, %253 : vector<16x128xf32>
    %261 = arith.addf %208, %260 : vector<16x128xf32>
    %c0_133 = arith.constant 0 : index
    %c1_134 = arith.constant 1 : index
    %262 = memref.load %arg1[%c0_133, %c1_134] : memref<3x9xf32, #tpu.memory_space<smem>>
    %263 = vector.broadcast %262 : f32 to vector<16x128xf32>
    %264 = arith.mulf %263, %255 : vector<16x128xf32>
    %265 = arith.addf %261, %264 : vector<16x128xf32>
    %c0_135 = arith.constant 0 : index
    %c2_136 = arith.constant 2 : index
    %266 = memref.load %arg1[%c0_135, %c2_136] : memref<3x9xf32, #tpu.memory_space<smem>>
    %267 = vector.broadcast %266 : f32 to vector<16x128xf32>
    %268 = arith.mulf %267, %257 : vector<16x128xf32>
    %269 = arith.addf %265, %268 : vector<16x128xf32>
    %c1_137 = arith.constant 1 : index
    %c3_138 = arith.constant 3 : index
    %c0_139 = arith.constant 0 : index
    %270 = vector.load %arg5[%c1_137, %c3_138, %c0_139] : memref<2x24x256xf32, #tpu.memory_space<vmem>>, vector<1x16x256xf32>
    %271 = vector.shape_cast %270 : vector<1x16x256xf32> to vector<16x256xf32>
    %272 = vector.extract_strided_slice %271 {offsets = [0, 0], sizes = [16, 128], strides = [1, 1]} : vector<16x256xf32> to vector<16x128xf32>
    %c255_i32_140 = arith.constant 255 : i32
    %273 = tpu.dynamic_rotate %271 by %c255_i32_140 dim 1 : vector<16x256xf32>, i32 -> vector<16x256xf32>
    %274 = vector.extract_strided_slice %273 {offsets = [0, 0], sizes = [16, 128], strides = [1, 1]} : vector<16x256xf32> to vector<16x128xf32>
    %c254_i32_141 = arith.constant 254 : i32
    %275 = tpu.dynamic_rotate %271 by %c254_i32_141 dim 1 : vector<16x256xf32>, i32 -> vector<16x256xf32>
    %276 = vector.extract_strided_slice %275 {offsets = [0, 0], sizes = [16, 128], strides = [1, 1]} : vector<16x256xf32> to vector<16x128xf32>
    %c253_i32_142 = arith.constant 253 : i32
    %277 = tpu.dynamic_rotate %271 by %c253_i32_142 dim 1 : vector<16x256xf32>, i32 -> vector<16x256xf32>
    %278 = vector.extract_strided_slice %277 {offsets = [0, 0], sizes = [16, 128], strides = [1, 1]} : vector<16x256xf32> to vector<16x128xf32>
    %c252_i32_143 = arith.constant 252 : i32
    %279 = tpu.dynamic_rotate %271 by %c252_i32_143 dim 1 : vector<16x256xf32>, i32 -> vector<16x256xf32>
    %280 = vector.extract_strided_slice %279 {offsets = [0, 0], sizes = [16, 128], strides = [1, 1]} : vector<16x256xf32> to vector<16x128xf32>
    %c251_i32_144 = arith.constant 251 : i32
    %281 = tpu.dynamic_rotate %271 by %c251_i32_144 dim 1 : vector<16x256xf32>, i32 -> vector<16x256xf32>
    %282 = vector.extract_strided_slice %281 {offsets = [0, 0], sizes = [16, 128], strides = [1, 1]} : vector<16x256xf32> to vector<16x128xf32>
    %c250_i32_145 = arith.constant 250 : i32
    %283 = tpu.dynamic_rotate %271 by %c250_i32_145 dim 1 : vector<16x256xf32>, i32 -> vector<16x256xf32>
    %284 = vector.extract_strided_slice %283 {offsets = [0, 0], sizes = [16, 128], strides = [1, 1]} : vector<16x256xf32> to vector<16x128xf32>
    %c0_146 = arith.constant 0 : index
    %c3_147 = arith.constant 3 : index
    %285 = memref.load %arg1[%c0_146, %c3_147] : memref<3x9xf32, #tpu.memory_space<smem>>
    %286 = vector.broadcast %285 : f32 to vector<16x128xf32>
    %287 = arith.mulf %286, %276 : vector<16x128xf32>
    %288 = arith.addf %269, %287 : vector<16x128xf32>
    %c0_148 = arith.constant 0 : index
    %c4_149 = arith.constant 4 : index
    %289 = memref.load %arg1[%c0_148, %c4_149] : memref<3x9xf32, #tpu.memory_space<smem>>
    %290 = vector.broadcast %289 : f32 to vector<16x128xf32>
    %291 = arith.mulf %290, %278 : vector<16x128xf32>
    %292 = arith.addf %288, %291 : vector<16x128xf32>
    %c0_150 = arith.constant 0 : index
    %c5_151 = arith.constant 5 : index
    %293 = memref.load %arg1[%c0_150, %c5_151] : memref<3x9xf32, #tpu.memory_space<smem>>
    %294 = vector.broadcast %293 : f32 to vector<16x128xf32>
    %295 = arith.mulf %294, %280 : vector<16x128xf32>
    %296 = arith.addf %292, %295 : vector<16x128xf32>
    %c1_152 = arith.constant 1 : index
    %c3_153 = arith.constant 3 : index
    %297 = memref.load %arg1[%c1_152, %c3_153] : memref<3x9xf32, #tpu.memory_space<smem>>
    %298 = vector.broadcast %297 : f32 to vector<16x128xf32>
    %299 = arith.mulf %298, %274 : vector<16x128xf32>
    %300 = arith.addf %249, %299 : vector<16x128xf32>
    %c1_154 = arith.constant 1 : index
    %c4_155 = arith.constant 4 : index
    %301 = memref.load %arg1[%c1_154, %c4_155] : memref<3x9xf32, #tpu.memory_space<smem>>
    %302 = vector.broadcast %301 : f32 to vector<16x128xf32>
    %303 = arith.mulf %302, %278 : vector<16x128xf32>
    %304 = arith.addf %300, %303 : vector<16x128xf32>
    %c1_156 = arith.constant 1 : index
    %c5_157 = arith.constant 5 : index
    %305 = memref.load %arg1[%c1_156, %c5_157] : memref<3x9xf32, #tpu.memory_space<smem>>
    %306 = vector.broadcast %305 : f32 to vector<16x128xf32>
    %307 = arith.mulf %306, %282 : vector<16x128xf32>
    %308 = arith.addf %304, %307 : vector<16x128xf32>
    %c2_158 = arith.constant 2 : index
    %c3_159 = arith.constant 3 : index
    %309 = memref.load %arg1[%c2_158, %c3_159] : memref<3x9xf32, #tpu.memory_space<smem>>
    %310 = vector.broadcast %309 : f32 to vector<16x128xf32>
    %311 = arith.mulf %310, %272 : vector<16x128xf32>
    %312 = arith.addf %229, %311 : vector<16x128xf32>
    %c2_160 = arith.constant 2 : index
    %c4_161 = arith.constant 4 : index
    %313 = memref.load %arg1[%c2_160, %c4_161] : memref<3x9xf32, #tpu.memory_space<smem>>
    %314 = vector.broadcast %313 : f32 to vector<16x128xf32>
    %315 = arith.mulf %314, %278 : vector<16x128xf32>
    %316 = arith.addf %312, %315 : vector<16x128xf32>
    %c2_162 = arith.constant 2 : index
    %c5_163 = arith.constant 5 : index
    %317 = memref.load %arg1[%c2_162, %c5_163] : memref<3x9xf32, #tpu.memory_space<smem>>
    %318 = vector.broadcast %317 : f32 to vector<16x128xf32>
    %319 = arith.mulf %318, %284 : vector<16x128xf32>
    %320 = arith.addf %316, %319 : vector<16x128xf32>
    %c1_164 = arith.constant 1 : index
    %c4_165 = arith.constant 4 : index
    %c0_166 = arith.constant 0 : index
    %321 = vector.load %arg5[%c1_164, %c4_165, %c0_166] : memref<2x24x256xf32, #tpu.memory_space<vmem>>, vector<1x16x256xf32>
    %322 = vector.shape_cast %321 : vector<1x16x256xf32> to vector<16x256xf32>
    %c254_i32_167 = arith.constant 254 : i32
    %323 = tpu.dynamic_rotate %322 by %c254_i32_167 dim 1 : vector<16x256xf32>, i32 -> vector<16x256xf32>
    %324 = vector.extract_strided_slice %323 {offsets = [0, 0], sizes = [16, 128], strides = [1, 1]} : vector<16x256xf32> to vector<16x128xf32>
    %c253_i32_168 = arith.constant 253 : i32
    %325 = tpu.dynamic_rotate %322 by %c253_i32_168 dim 1 : vector<16x256xf32>, i32 -> vector<16x256xf32>
    %326 = vector.extract_strided_slice %325 {offsets = [0, 0], sizes = [16, 128], strides = [1, 1]} : vector<16x256xf32> to vector<16x128xf32>
    %c252_i32_169 = arith.constant 252 : i32
    %327 = tpu.dynamic_rotate %322 by %c252_i32_169 dim 1 : vector<16x256xf32>, i32 -> vector<16x256xf32>
    %328 = vector.extract_strided_slice %327 {offsets = [0, 0], sizes = [16, 128], strides = [1, 1]} : vector<16x256xf32> to vector<16x128xf32>
    %c0_170 = arith.constant 0 : index
    %c6_171 = arith.constant 6 : index
    %329 = memref.load %arg1[%c0_170, %c6_171] : memref<3x9xf32, #tpu.memory_space<smem>>
    %330 = vector.broadcast %329 : f32 to vector<16x128xf32>
    %331 = arith.mulf %330, %324 : vector<16x128xf32>
    %332 = arith.addf %296, %331 : vector<16x128xf32>
    %c0_172 = arith.constant 0 : index
    %c7_173 = arith.constant 7 : index
    %333 = memref.load %arg1[%c0_172, %c7_173] : memref<3x9xf32, #tpu.memory_space<smem>>
    %334 = vector.broadcast %333 : f32 to vector<16x128xf32>
    %335 = arith.mulf %334, %326 : vector<16x128xf32>
    %336 = arith.addf %332, %335 : vector<16x128xf32>
    %c0_174 = arith.constant 0 : index
    %c8_175 = arith.constant 8 : index
    %337 = memref.load %arg1[%c0_174, %c8_175] : memref<3x9xf32, #tpu.memory_space<smem>>
    %338 = vector.broadcast %337 : f32 to vector<16x128xf32>
    %339 = arith.mulf %338, %328 : vector<16x128xf32>
    %340 = arith.addf %336, %339 : vector<16x128xf32>
    %c1_176 = arith.constant 1 : index
    %c5_177 = arith.constant 5 : index
    %c0_178 = arith.constant 0 : index
    %341 = vector.load %arg5[%c1_176, %c5_177, %c0_178] : memref<2x24x256xf32, #tpu.memory_space<vmem>>, vector<1x16x256xf32>
    %342 = vector.shape_cast %341 : vector<1x16x256xf32> to vector<16x256xf32>
    %c255_i32_179 = arith.constant 255 : i32
    %343 = tpu.dynamic_rotate %342 by %c255_i32_179 dim 1 : vector<16x256xf32>, i32 -> vector<16x256xf32>
    %344 = vector.extract_strided_slice %343 {offsets = [0, 0], sizes = [16, 128], strides = [1, 1]} : vector<16x256xf32> to vector<16x128xf32>
    %c253_i32_180 = arith.constant 253 : i32
    %345 = tpu.dynamic_rotate %342 by %c253_i32_180 dim 1 : vector<16x256xf32>, i32 -> vector<16x256xf32>
    %346 = vector.extract_strided_slice %345 {offsets = [0, 0], sizes = [16, 128], strides = [1, 1]} : vector<16x256xf32> to vector<16x128xf32>
    %c251_i32_181 = arith.constant 251 : i32
    %347 = tpu.dynamic_rotate %342 by %c251_i32_181 dim 1 : vector<16x256xf32>, i32 -> vector<16x256xf32>
    %348 = vector.extract_strided_slice %347 {offsets = [0, 0], sizes = [16, 128], strides = [1, 1]} : vector<16x256xf32> to vector<16x128xf32>
    %c1_182 = arith.constant 1 : index
    %c6_183 = arith.constant 6 : index
    %349 = memref.load %arg1[%c1_182, %c6_183] : memref<3x9xf32, #tpu.memory_space<smem>>
    %350 = vector.broadcast %349 : f32 to vector<16x128xf32>
    %351 = arith.mulf %350, %344 : vector<16x128xf32>
    %352 = arith.addf %308, %351 : vector<16x128xf32>
    %c1_184 = arith.constant 1 : index
    %c7_185 = arith.constant 7 : index
    %353 = memref.load %arg1[%c1_184, %c7_185] : memref<3x9xf32, #tpu.memory_space<smem>>
    %354 = vector.broadcast %353 : f32 to vector<16x128xf32>
    %355 = arith.mulf %354, %346 : vector<16x128xf32>
    %356 = arith.addf %352, %355 : vector<16x128xf32>
    %c1_186 = arith.constant 1 : index
    %c8_187 = arith.constant 8 : index
    %357 = memref.load %arg1[%c1_186, %c8_187] : memref<3x9xf32, #tpu.memory_space<smem>>
    %358 = vector.broadcast %357 : f32 to vector<16x128xf32>
    %359 = arith.mulf %358, %348 : vector<16x128xf32>
    %360 = arith.addf %356, %359 : vector<16x128xf32>
    %c1_188 = arith.constant 1 : index
    %c6_189 = arith.constant 6 : index
    %c0_190 = arith.constant 0 : index
    %361 = vector.load %arg5[%c1_188, %c6_189, %c0_190] : memref<2x24x256xf32, #tpu.memory_space<vmem>>, vector<1x16x256xf32>
    %362 = vector.shape_cast %361 : vector<1x16x256xf32> to vector<16x256xf32>
    %363 = vector.extract_strided_slice %362 {offsets = [0, 0], sizes = [16, 128], strides = [1, 1]} : vector<16x256xf32> to vector<16x128xf32>
    %c253_i32_191 = arith.constant 253 : i32
    %364 = tpu.dynamic_rotate %362 by %c253_i32_191 dim 1 : vector<16x256xf32>, i32 -> vector<16x256xf32>
    %365 = vector.extract_strided_slice %364 {offsets = [0, 0], sizes = [16, 128], strides = [1, 1]} : vector<16x256xf32> to vector<16x128xf32>
    %c250_i32_192 = arith.constant 250 : i32
    %366 = tpu.dynamic_rotate %362 by %c250_i32_192 dim 1 : vector<16x256xf32>, i32 -> vector<16x256xf32>
    %367 = vector.extract_strided_slice %366 {offsets = [0, 0], sizes = [16, 128], strides = [1, 1]} : vector<16x256xf32> to vector<16x128xf32>
    %c2_193 = arith.constant 2 : index
    %c6_194 = arith.constant 6 : index
    %368 = memref.load %arg1[%c2_193, %c6_194] : memref<3x9xf32, #tpu.memory_space<smem>>
    %369 = vector.broadcast %368 : f32 to vector<16x128xf32>
    %370 = arith.mulf %369, %363 : vector<16x128xf32>
    %371 = arith.addf %320, %370 : vector<16x128xf32>
    %c2_195 = arith.constant 2 : index
    %c7_196 = arith.constant 7 : index
    %372 = memref.load %arg1[%c2_195, %c7_196] : memref<3x9xf32, #tpu.memory_space<smem>>
    %373 = vector.broadcast %372 : f32 to vector<16x128xf32>
    %374 = arith.mulf %373, %365 : vector<16x128xf32>
    %375 = arith.addf %371, %374 : vector<16x128xf32>
    %c2_197 = arith.constant 2 : index
    %c8_198 = arith.constant 8 : index
    %376 = memref.load %arg1[%c2_197, %c8_198] : memref<3x9xf32, #tpu.memory_space<smem>>
    %377 = vector.broadcast %376 : f32 to vector<16x128xf32>
    %378 = arith.mulf %377, %367 : vector<16x128xf32>
    %379 = arith.addf %375, %378 : vector<16x128xf32>
    %cst_199 = arith.constant 0.000000e+00 : f32
    %380 = vector.broadcast %cst_199 : f32 to vector<16x128xf32>
    %c0_200 = arith.constant 0 : index
    %381 = memref.load %arg2[%c0_200] : memref<3xf32, #tpu.memory_space<smem>>
    %382 = vector.broadcast %381 : f32 to vector<16x128xf32>
    %383 = arith.addf %340, %382 : vector<16x128xf32>
    %cst_201 = arith.constant 0.000000e+00 : f32
    %384 = vector.broadcast %cst_201 : f32 to vector<16x128xf32>
    %385 = arith.maximumf %383, %384 : vector<16x128xf32>
    %c0_202 = arith.constant 0 : index
    %386 = memref.load %arg3[%c0_202] : memref<3xf32, #tpu.memory_space<smem>>
    %387 = vector.broadcast %386 : f32 to vector<16x128xf32>
    %388 = arith.mulf %385, %387 : vector<16x128xf32>
    %389 = arith.addf %380, %388 : vector<16x128xf32>
    %c1_203 = arith.constant 1 : index
    %390 = memref.load %arg2[%c1_203] : memref<3xf32, #tpu.memory_space<smem>>
    %391 = vector.broadcast %390 : f32 to vector<16x128xf32>
    %392 = arith.addf %360, %391 : vector<16x128xf32>
    %cst_204 = arith.constant 0.000000e+00 : f32
    %393 = vector.broadcast %cst_204 : f32 to vector<16x128xf32>
    %394 = arith.maximumf %392, %393 : vector<16x128xf32>
    %c1_205 = arith.constant 1 : index
    %395 = memref.load %arg3[%c1_205] : memref<3xf32, #tpu.memory_space<smem>>
    %396 = vector.broadcast %395 : f32 to vector<16x128xf32>
    %397 = arith.mulf %394, %396 : vector<16x128xf32>
    %398 = arith.addf %389, %397 : vector<16x128xf32>
    %c2_206 = arith.constant 2 : index
    %399 = memref.load %arg2[%c2_206] : memref<3xf32, #tpu.memory_space<smem>>
    %400 = vector.broadcast %399 : f32 to vector<16x128xf32>
    %401 = arith.addf %379, %400 : vector<16x128xf32>
    %cst_207 = arith.constant 0.000000e+00 : f32
    %402 = vector.broadcast %cst_207 : f32 to vector<16x128xf32>
    %403 = arith.maximumf %401, %402 : vector<16x128xf32>
    %c2_208 = arith.constant 2 : index
    %404 = memref.load %arg3[%c2_208] : memref<3xf32, #tpu.memory_space<smem>>
    %405 = vector.broadcast %404 : f32 to vector<16x128xf32>
    %406 = arith.mulf %403, %405 : vector<16x128xf32>
    %407 = arith.addf %398, %406 : vector<16x128xf32>
    %c0_209 = arith.constant 0 : index
    %408 = memref.load %arg4[%c0_209] : memref<1xf32, #tpu.memory_space<smem>>
    %409 = vector.broadcast %408 : f32 to vector<16x128xf32>
    %410 = arith.addf %407, %409 : vector<16x128xf32>
    %cst_210 = arith.constant 0.000000e+00 : f32
    %411 = vector.broadcast %cst_210 : f32 to vector<16x128xf32>
    %412 = arith.maximumf %410, %411 : vector<16x128xf32>
    %c1_211 = arith.constant 1 : index
    %c0_212 = arith.constant 0 : index
    %c0_213 = arith.constant 0 : index
    %413 = vector.load %arg6[%c1_211, %c0_212, %c0_213] : memref<2x16x128xf32, #tpu.memory_space<vmem>>, vector<1x16x128xf32>
    %414 = vector.shape_cast %413 : vector<1x16x128xf32> to vector<16x128xf32>
    %415 = vector.shape_cast %412 : vector<16x128xf32> to vector<1x16x128xf32>
    tpu.vector_store %arg6[%c1_211, %c0_212, %c0_213], %415 {strides = array<i32>} : memref<2x16x128xf32, #tpu.memory_space<vmem>>, vector<1x16x128xf32>,
    return
  }
  func.func @transform_0(%arg0: i32) -> (i32, i32) {
    %c0_i32 = arith.constant 0 : i32
    %c0_i32_0 = arith.constant 0 : i32
    %c0_i32_1 = arith.constant 0 : i32
    return %c0_i32, %c0_i32_0 : i32, i32
  }
  func.func @transform_1(%arg0: i32) -> i32 {
    %c0_i32 = arith.constant 0 : i32
    %c0_i32_0 = arith.constant 0 : i32
    return %c0_i32 : i32
  }
  func.func @transform_2(%arg0: i32) -> i32 {
    %c0_i32 = arith.constant 0 : i32
    %c0_i32_0 = arith.constant 0 : i32
    return %c0_i32 : i32
  }
  func.func @transform_3(%arg0: i32) -> i32 {
    %c0_i32 = arith.constant 0 : i32
    %c0_i32_0 = arith.constant 0 : i32
    return %c0_i32 : i32
  }
  func.func @transform_4(%arg0: i32) -> (i32, i32, i32) {
    %c0_i32 = arith.constant 0 : i32
    %c0_i32_0 = arith.constant 0 : i32
    %c0_i32_1 = arith.constant 0 : i32
    return %arg0, %c0_i32, %c0_i32_0 : i32, i32, i32
  }
  func.func @transform_5(%arg0: i32) -> (i32, i32, i32) {
    %c0_i32 = arith.constant 0 : i32
    %c0_i32_0 = arith.constant 0 : i32
    %c0_i32_1 = arith.constant 0 : i32
    return %arg0, %c0_i32, %c0_i32_0 : i32, i32, i32
  }
}

</mosaic_0001>

<llo_original>
// kernel: tpu_custom_call.1
$region0: #{tpu_custom_call.1}
  #allocation0 [shape = 'u32[]', space=smem, size = 0x4, offset = 0x4, fixed_abs, tag = 'smem constant byte address 0x4 - core index']
  #allocation1 [shape = 'u32[144,128]{1,0:T(1,128)}', space=vmem, size = 0x12000, scoped, tag = 'internal scratch']
  #allocation2 [shape = 'f32[1]{0:T(128)S(6)}', space=smem, size = 0x200, scoped, tag = 'scoped memory for tpu_custom_call.1']
  %s0 = inlined_call_operand.hbm [shape: f32[3,9], index: 0, kind: input, shape index: {}]
  %s1 = inlined_call_operand.vmem [shape: f32[3], index: 1, kind: input, shape index: {}]
  %s2 = inlined_call_operand.vmem [shape: f32[3], index: 2, kind: input, shape index: {}]
  %s3 = inlined_call_operand.<no memory space> [shape: f32[1], index: 3, kind: input, shape index: {}]
  %s4 = inlined_call_operand.hbm [shape: f32[2,24,256], index: 4, kind: input, shape index: {}]
  %s5 = inlined_call_operand.hbm [shape: f32[2,16,128], index: 5, kind: output, shape index: {}]
  %s6 = sld [smem:[#allocation0]]
  $region46: #{tpu_custom_call.1} parent=0
    _
  %s8 = ssub.s32 1, %s6
  %s9 = scalar_select 0, %s8, %s6
  %10 = sst [smem:[#allocation2]] %s3
  $region1: #{tpu_custom_call.1} parent=0
    #allocation3 [shape = 'u8[2048]{0}', space=smem, size = 0x800, scoped, tag = 'input window, operand 0, single buffered']
    #allocation4 [shape = 's32[1]{0}', space=sflag, size = 0x4, scoped, tag = 'scoped memory for tpu_custom_call.1']
    #allocation5 [shape = 's32[1]{0}', space=sflag, size = 0x4, scoped, tag = 'scoped memory for tpu_custom_call.1']
    #allocation6 [shape = 's32[1]{0}', space=sflag, size = 0x4, scoped, tag = 'scoped memory for tpu_custom_call.1']
    #allocation7 [shape = 's32[1]{0}', space=sflag, size = 0x4, scoped, tag = 'scoped memory for tpu_custom_call.1']
    #allocation8 [shape = 'u8[512]{0}', space=smem, size = 0x200, scoped, tag = 'input window, operand 1, single buffered']
    #allocation9 [shape = 'u8[512]{0}', space=smem, size = 0x200, scoped, tag = 'input window, operand 2, single buffered']
    #allocation10 [shape = 's32[1]{0}', space=sflag, size = 0x4, scoped, tag = 'scoped memory for tpu_custom_call.1']
    #allocation11 [shape = 'u8[49152]{0}', space=vmem, size = 0xc000, scoped, tag = 'input window, operand 4, single buffered']
    #allocation12 [shape = 'u8[16384]{0}', space=vmem, size = 0x4000, scoped, tag = 'output window, operand 0, single buffered']
    %11 = vsyncpa [#allocation6], 0
    %12 = vsyncpa [#allocation7], 0
    %13 = vsyncpa [#allocation10], 0
    %14 = vsyncpa [#allocation4], 0
    %15 = vsyncpa [#allocation5], 0
    // Predicated region
    $region2: #{tpu_custom_call.1} parent=1 // pred_check
      _
    $region3: #{tpu_custom_call.1} parent=1 // pred_check_branch
      %17 = sbr.rel (0) target = $region5
    $region4: #{tpu_custom_call.1} parent=1 // pred_region
      %s19 = ssub.s32 64, 64
      %20 = vsyncadd [#allocation6], %s19
      %23 = dma.hbm_to_smem %s0, 64, [#allocation3], [#allocation6]
    $region5: #{tpu_custom_call.1} parent=1 // pred_fallthru
      _
    // Predicated region
    $region6: #{tpu_custom_call.1} parent=1 // pred_check
      _
    $region7: #{tpu_custom_call.1} parent=1 // pred_check_branch
      %25 = sbr.rel (0) target = $region9
    $region8: #{tpu_custom_call.1} parent=1 // pred_region
      %s27 = ssub.s32 16, 16
      %28 = vsyncadd [#allocation7], %s27
      %s30 = sshll.u32 %s1, 4
      %s31 = int_to_ptr.vmem [resolvable:$true] %s30
      %33 = dma.vmem_to_smem %s31, 16, [#allocation8], [#allocation7]
    $region9: #{tpu_custom_call.1} parent=1 // pred_fallthru
      _
    // Predicated region
    $region10: #{tpu_custom_call.1} parent=1 // pred_check
      _
    $region11: #{tpu_custom_call.1} parent=1 // pred_check_branch
      %35 = sbr.rel (0) target = $region13
    $region12: #{tpu_custom_call.1} parent=1 // pred_region
      %s37 = ssub.s32 16, 16
      %38 = vsyncadd [#allocation10], %s37
      %s40 = sshll.u32 %s2, 4
      %s41 = int_to_ptr.vmem [resolvable:$true] %s40
      %43 = dma.vmem_to_smem %s41, 16, [#allocation9], [#allocation10]
    $region13: #{tpu_custom_call.1} parent=1 // pred_fallthru
      _
    // Predicated region
    $region14: #{tpu_custom_call.1} parent=1 // pred_check
      _
    $region15: #{tpu_custom_call.1} parent=1 // pred_check_branch
      %45 = sbr.rel (0) target = $region17
    $region16: #{tpu_custom_call.1} parent=1 // pred_region
      _
    $region17: #{tpu_custom_call.1} parent=1 // pred_fallthru
      _
    // Predicated region
    $region18: #{tpu_custom_call.1} parent=1 // pred_check
      _
    $region19: #{tpu_custom_call.1} parent=1 // pred_check_branch
      %47 = sbr.rel (0) target = $region21
    $region20: #{tpu_custom_call.1} parent=1 // pred_region
      %s49 = ssub.s32 1536, 1536
      %50 = vsyncadd [#allocation4], %s49
      %s51 = sshll.u32 [#allocation11], 4
      %s52 = int_to_ptr.vmem [resolvable:$true] %s51
      %57 = dma.hbm_to_vmem [thread:$0]  %s4, 1536, %s52, [#allocation4], 256, 256, 16
    $region21: #{tpu_custom_call.1} parent=1 // pred_fallthru
      _
    // Predicated region
    $region22: #{tpu_custom_call.1} parent=1 // pred_check
      _
    $region23: #{tpu_custom_call.1} parent=1 // pred_check_branch
      %59 = sbr.rel (0) target = $region25
    $region24: #{tpu_custom_call.1} parent=1 // pred_region
      %60 = dma.done [#allocation6], 64
    $region25: #{tpu_custom_call.1} parent=1 // pred_fallthru
      _
    // Predicated region
    $region26: #{tpu_custom_call.1} parent=1 // pred_check
      _
    $region27: #{tpu_custom_call.1} parent=1 // pred_check_branch
      %62 = sbr.rel (0) target = $region29
    $region28: #{tpu_custom_call.1} parent=1 // pred_region
      %63 = dma.done [#allocation7], 16
    $region29: #{tpu_custom_call.1} parent=1 // pred_fallthru
      _
    // Predicated region
    $region30: #{tpu_custom_call.1} parent=1 // pred_check
      _
    $region31: #{tpu_custom_call.1} parent=1 // pred_check_branch
      %65 = sbr.rel (0) target = $region33
    $region32: #{tpu_custom_call.1} parent=1 // pred_region
      %66 = dma.done [#allocation10], 16
    $region33: #{tpu_custom_call.1} parent=1 // pred_fallthru
      _
    // Predicated region
    $region34: #{tpu_custom_call.1} parent=1 // pred_check
      _
    $region35: #{tpu_custom_call.1} parent=1 // pred_check_branch
      %68 = sbr.rel (0) target = $region37
    $region36: #{tpu_custom_call.1} parent=1 // pred_region
      %69 = dma.done [#allocation4], 1536
    $region37: #{tpu_custom_call.1} parent=1 // pred_fallthru
      _
    %70 = sfence
    %v71 = vld [vmem:[#allocation11] sm:$0xff]
    %v72 = vld [vmem:[#allocation11 + $0x8] sm:$0xff]
    %v73 = vld [vmem:[#allocation11 + $0x10] sm:$0xff]
    %v74 = vld [vmem:[#allocation11 + $0x18] sm:$0xff]
    %75 = vrot.lane.b32.xlu0 %v71, 125
    %v76 = vpop.permute.xlu0 %75
    %77 = vrot.lane.b32.xlu0 %v73, 125
    %v78 = vpop.permute.xlu0 %77
    %79 = vrot.lane.b32.xlu0 %v72, 125
    %v80 = vpop.permute.xlu0 %79
    %81 = vrot.lane.b32.xlu0 %v74, 125
    %v82 = vpop.permute.xlu0 %81
    %v83 = vlaneseq
    %v84 = vand.u32 %v83, 127
    %vm85 = vcmp.lt.s32.totalorder %v84, 125
    %v86 = vsel %vm85, %v76, %v80
    %v87 = vsel %vm85, %v78, %v82
    %88 = vrot.lane.b32.xlu0 %v71, 122
    %v89 = vpop.permute.xlu0 %88
    %90 = vrot.lane.b32.xlu0 %v73, 122
    %v91 = vpop.permute.xlu0 %90
    %92 = vrot.lane.b32.xlu0 %v72, 122
    %v93 = vpop.permute.xlu0 %92
    %94 = vrot.lane.b32.xlu0 %v74, 122
    %v95 = vpop.permute.xlu0 %94
    %vm96 = vcmp.lt.s32.totalorder %v84, 122
    %v97 = vsel %vm96, %v89, %v93
    %v98 = vsel %vm96, %v91, %v95
    %s99 = sld [smem:[#allocation3 + $0x100]]
    %v100 = vstv %s99
    %v101 = vmul.f32 %v100, %v71
    %v102 = vmul.f32 %v100, %v73
    %v103 = vadd.f32 %v101, 0.0
    %v104 = vadd.f32 %v102, 0.0
    %s105 = sld [smem:[#allocation3 + $0x101]]
    %v106 = vstv %s105
    %v107 = vmul.f32 %v106, %v86
    %v108 = vmul.f32 %v106, %v87
    %v109 = vadd.f32 %v103, %v107
    %v110 = vadd.f32 %v104, %v108
    %s111 = sld [smem:[#allocation3 + $0x102]]
    %v112 = vstv %s111
    %v113 = vmul.f32 %v112, %v97
    %v114 = vmul.f32 %v112, %v98
    %v115 = vadd.f32 %v109, %v113
    %v116 = vadd.f32 %v110, %v114
    %v117 = vld [vmem:[#allocation11] sm:$0xfe]
    %v118 = vld [vmem:[#allocation11 + $0x8] sm:$0xfe]
    %v119 = vld [vmem:[#allocation11 + $0x10] sm:$0xff]
    %v120 = vld [vmem:[#allocation11 + $0x18] sm:$0xff]
    %v121 = vld [vmem:[#allocation11 + $0x20] sm:$0x1]
    %v122 = vld [vmem:[#allocation11 + $0x28] sm:$0x1]
    %vm129 = vcmask 1046528
    %v130 = vrot.slane %v117, 1
    %v131 = vrot.slane %v119, 1
    %v132 = vsel %vm129, %v130, %v131
    %v133 = vrot.slane %v118, 1
    %v134 = vrot.slane %v120, 1
    %v135 = vsel %vm129, %v133, %v134
    %v136 = vrot.slane %v121, 1
    %v137 = vsel %vm129, %v131, %v136
    %v138 = vrot.slane %v122, 1
    %v139 = vsel %vm129, %v134, %v138
    %144 = vrot.lane.b32.xlu0 %v132, 127
    %v145 = vpop.permute.xlu0 %144
    %146 = vrot.lane.b32.xlu0 %v137, 127
    %v147 = vpop.permute.xlu0 %146
    %148 = vrot.lane.b32.xlu0 %v135, 127
    %v149 = vpop.permute.xlu0 %148
    %150 = vrot.lane.b32.xlu0 %v139, 127
    %v151 = vpop.permute.xlu0 %150
    %vm152 = vcmp.lt.s32.totalorder %v84, 127
    %v153 = vsel %vm152, %v145, %v149
    %v154 = vsel %vm152, %v147, %v151
    %155 = vrot.lane.b32.xlu0 %v132, 125
    %v156 = vpop.permute.xlu0 %155
    %157 = vrot.lane.b32.xlu0 %v137, 125
    %v158 = vpop.permute.xlu0 %157
    %159 = vrot.lane.b32.xlu0 %v135, 125
    %v160 = vpop.permute.xlu0 %159
    %161 = vrot.lane.b32.xlu0 %v139, 125
    %v162 = vpop.permute.xlu0 %161
    %v163 = vsel %vm85, %v156, %v160
    %v164 = vsel %vm85, %v158, %v162
    %165 = vrot.lane.b32.xlu0 %v132, 123
    %v166 = vpop.permute.xlu0 %165
    %167 = vrot.lane.b32.xlu0 %v137, 123
    %v168 = vpop.permute.xlu0 %167
    %169 = vrot.lane.b32.xlu0 %v135, 123
    %v170 = vpop.permute.xlu0 %169
    %171 = vrot.lane.b32.xlu0 %v139, 123
    %v172 = vpop.permute.xlu0 %171
    %vm173 = vcmp.lt.s32.totalorder %v84, 123
    %v174 = vsel %vm173, %v166, %v170
    %v175 = vsel %vm173, %v168, %v172
    %s176 = sld [smem:[#allocation3 + $0x80]]
    %v177 = vstv %s176
    %v178 = vmul.f32 %v177, %v153
    %v179 = vmul.f32 %v177, %v154
    %v180 = vadd.f32 %v178, 0.0
    %v181 = vadd.f32 %v179, 0.0
    %s182 = sld [smem:[#allocation3 + $0x81]]
    %v183 = vstv %s182
    %v184 = vmul.f32 %v183, %v163
    %v185 = vmul.f32 %v183, %v164
    %v186 = vadd.f32 %v180, %v184
    %v187 = vadd.f32 %v181, %v185
    %s188 = sld [smem:[#allocation3 + $0x82]]
    %v189 = vstv %s188
    %v190 = vmul.f32 %v189, %v174
    %v191 = vmul.f32 %v189, %v175
    %v192 = vadd.f32 %v186, %v190
    %v193 = vadd.f32 %v187, %v191
    %v194 = vld [vmem:[#allocation11] sm:$0xfc]
    %v195 = vld [vmem:[#allocation11 + $0x8] sm:$0xfc]
    %v196 = vld [vmem:[#allocation11 + $0x20] sm:$0x3]
    %v197 = vld [vmem:[#allocation11 + $0x28] sm:$0x3]
    %vm202 = vcmask 1045504
    %v203 = vrot.slane %v194, 2
    %v204 = vrot.slane %v119, 2
    %v205 = vsel %vm202, %v203, %v204
    %v206 = vrot.slane %v195, 2
    %v207 = vrot.slane %v120, 2
    %v208 = vsel %vm202, %v206, %v207
    %v209 = vrot.slane %v196, 2
    %v210 = vsel %vm202, %v204, %v209
    %v211 = vrot.slane %v197, 2
    %v212 = vsel %vm202, %v207, %v211
    %217 = vrot.lane.b32.xlu0 %v205, 126
    %v218 = vpop.permute.xlu0 %217
    %219 = vrot.lane.b32.xlu0 %v210, 126
    %v220 = vpop.permute.xlu0 %219
    %221 = vrot.lane.b32.xlu0 %v208, 126
    %v222 = vpop.permute.xlu0 %221
    %223 = vrot.lane.b32.xlu0 %v212, 126
    %v224 = vpop.permute.xlu0 %223
    %vm225 = vcmp.lt.s32.totalorder %v84, 126
    %v226 = vsel %vm225, %v218, %v222
    %v227 = vsel %vm225, %v220, %v224
    %228 = vrot.lane.b32.xlu0 %v205, 125
    %v229 = vpop.permute.xlu0 %228
    %230 = vrot.lane.b32.xlu0 %v210, 125
    %v231 = vpop.permute.xlu0 %230
    %232 = vrot.lane.b32.xlu0 %v208, 125
    %v233 = vpop.permute.xlu0 %232
    %234 = vrot.lane.b32.xlu0 %v212, 125
    %v235 = vpop.permute.xlu0 %234
    %v236 = vsel %vm85, %v229, %v233
    %v237 = vsel %vm85, %v231, %v235
    %238 = vrot.lane.b32.xlu0 %v205, 124
    %v239 = vpop.permute.xlu0 %238
    %240 = vrot.lane.b32.xlu0 %v210, 124
    %v241 = vpop.permute.xlu0 %240
    %242 = vrot.lane.b32.xlu0 %v208, 124
    %v243 = vpop.permute.xlu0 %242
    %244 = vrot.lane.b32.xlu0 %v212, 124
    %v245 = vpop.permute.xlu0 %244
    %vm246 = vcmp.lt.s32.totalorder %v84, 124
    %v247 = vsel %vm246, %v239, %v243
    %v248 = vsel %vm246, %v241, %v245
    %s249 = sld [smem:[#allocation3]]
    %v250 = vstv %s249
    %v251 = vmul.f32 %v250, %v226
    %v252 = vmul.f32 %v250, %v227
    %v253 = vadd.f32 %v251, 0.0
    %v254 = vadd.f32 %v252, 0.0
    %s255 = sld [smem:[#allocation3 + $0x1]]
    %v256 = vstv %s255
    %v257 = vmul.f32 %v256, %v236
    %v258 = vmul.f32 %v256, %v237
    %v259 = vadd.f32 %v253, %v257
    %v260 = vadd.f32 %v254, %v258
    %s261 = sld [smem:[#allocation3 + $0x2]]
    %v262 = vstv %s261
    %v263 = vmul.f32 %v262, %v247
    %v264 = vmul.f32 %v262, %v248
    %v265 = vadd.f32 %v259, %v263
    %v266 = vadd.f32 %v260, %v264
    %v267 = vld [vmem:[#allocation11] sm:$0xf8]
    %v268 = vld [vmem:[#allocation11 + $0x8] sm:$0xf8]
    %v269 = vld [vmem:[#allocation11 + $0x20] sm:$0x7]
    %v270 = vld [vmem:[#allocation11 + $0x28] sm:$0x7]
    %vm275 = vcmask 1044480
    %v276 = vrot.slane %v267, 3
    %v277 = vrot.slane %v119, 3
    %v278 = vsel %vm275, %v276, %v277
    %v279 = vrot.slane %v268, 3
    %v280 = vrot.slane %v120, 3
    %v281 = vsel %vm275, %v279, %v280
    %v282 = vrot.slane %v269, 3
    %v283 = vsel %vm275, %v277, %v282
    %v284 = vrot.slane %v270, 3
    %v285 = vsel %vm275, %v280, %v284
    %290 = vrot.lane.b32.xlu0 %v278, 127
    %v291 = vpop.permute.xlu0 %290
    %292 = vrot.lane.b32.xlu0 %v283, 127
    %v293 = vpop.permute.xlu0 %292
    %294 = vrot.lane.b32.xlu0 %v281, 127
    %v295 = vpop.permute.xlu0 %294
    %296 = vrot.lane.b32.xlu0 %v285, 127
    %v297 = vpop.permute.xlu0 %296
    %v298 = vsel %vm152, %v291, %v295
    %v299 = vsel %vm152, %v293, %v297
    %300 = vrot.lane.b32.xlu0 %v278, 126
    %v301 = vpop.permute.xlu0 %300
    %302 = vrot.lane.b32.xlu0 %v283, 126
    %v303 = vpop.permute.xlu0 %302
    %304 = vrot.lane.b32.xlu0 %v281, 126
    %v305 = vpop.permute.xlu0 %304
    %306 = vrot.lane.b32.xlu0 %v285, 126
    %v307 = vpop.permute.xlu0 %306
    %v308 = vsel %vm225, %v301, %v305
    %v309 = vsel %vm225, %v303, %v307
    %310 = vrot.lane.b32.xlu0 %v278, 125
    %v311 = vpop.permute.xlu0 %310
    %312 = vrot.lane.b32.xlu0 %v283, 125
    %v313 = vpop.permute.xlu0 %312
    %314 = vrot.lane.b32.xlu0 %v281, 125
    %v315 = vpop.permute.xlu0 %314
    %316 = vrot.lane.b32.xlu0 %v285, 125
    %v317 = vpop.permute.xlu0 %316
    %v318 = vsel %vm85, %v311, %v315
    %v319 = vsel %vm85, %v313, %v317
    %320 = vrot.lane.b32.xlu0 %v278, 124
    %v321 = vpop.permute.xlu0 %320
    %322 = vrot.lane.b32.xlu0 %v283, 124
    %v323 = vpop.permute.xlu0 %322
    %324 = vrot.lane.b32.xlu0 %v281, 124
    %v325 = vpop.permute.xlu0 %324
    %326 = vrot.lane.b32.xlu0 %v285, 124
    %v327 = vpop.permute.xlu0 %326
    %v328 = vsel %vm246, %v321, %v325
    %v329 = vsel %vm246, %v323, %v327
    %330 = vrot.lane.b32.xlu0 %v278, 123
    %v331 = vpop.permute.xlu0 %330
    %332 = vrot.lane.b32.xlu0 %v283, 123
    %v333 = vpop.permute.xlu0 %332
    %334 = vrot.lane.b32.xlu0 %v281, 123
    %v335 = vpop.permute.xlu0 %334
    %336 = vrot.lane.b32.xlu0 %v285, 123
    %v337 = vpop.permute.xlu0 %336
    %v338 = vsel %vm173, %v331, %v335
    %v339 = vsel %vm173, %v333, %v337
    %340 = vrot.lane.b32.xlu0 %v278, 122
    %v341 = vpop.permute.xlu0 %340
    %342 = vrot.lane.b32.xlu0 %v283, 122
    %v343 = vpop.permute.xlu0 %342
    %344 = vrot.lane.b32.xlu0 %v281, 122
    %v345 = vpop.permute.xlu0 %344
    %346 = vrot.lane.b32.xlu0 %v285, 122
    %v347 = vpop.permute.xlu0 %346
    %v348 = vsel %vm96, %v341, %v345
    %v349 = vsel %vm96, %v343, %v347
    %s350 = sld [smem:[#allocation3 + $0x3]]
    %v351 = vstv %s350
    %v352 = vmul.f32 %v351, %v308
    %v353 = vmul.f32 %v351, %v309
    %v354 = vadd.f32 %v265, %v352
    %v355 = vadd.f32 %v266, %v353
    %s356 = sld [smem:[#allocation3 + $0x4]]
    %v357 = vstv %s356
    %v358 = vmul.f32 %v357, %v318
    %v359 = vmul.f32 %v357, %v319
    %v360 = vadd.f32 %v354, %v358
    %v361 = vadd.f32 %v355, %v359
    %s362 = sld [smem:[#allocation3 + $0x5]]
    %v363 = vstv %s362
    %v364 = vmul.f32 %v363, %v328
    %v365 = vmul.f32 %v363, %v329
    %v366 = vadd.f32 %v360, %v364
    %v367 = vadd.f32 %v361, %v365
    %s368 = sld [smem:[#allocation3 + $0x83]]
    %v369 = vstv %s368
    %v370 = vmul.f32 %v369, %v298
    %v371 = vmul.f32 %v369, %v299
    %v372 = vadd.f32 %v192, %v370
    %v373 = vadd.f32 %v193, %v371
    %s374 = sld [smem:[#allocation3 + $0x84]]
    %v375 = vstv %s374
    %v376 = vmul.f32 %v375, %v318
    %v377 = vmul.f32 %v375, %v319
    %v378 = vadd.f32 %v372, %v376
    %v379 = vadd.f32 %v373, %v377
    %s380 = sld [smem:[#allocation3 + $0x85]]
    %v381 = vstv %s380
    %v382 = vmul.f32 %v381, %v338
    %v383 = vmul.f32 %v381, %v339
    %v384 = vadd.f32 %v378, %v382
    %v385 = vadd.f32 %v379, %v383
    %s386 = sld [smem:[#allocation3 + $0x103]]
    %v387 = vstv %s386
    %v388 = vmul.f32 %v387, %v267
    %v389 = vmul.f32 %v387, %v119
    %v390 = vmul.f32 %v387, %v269
    %v394 = vrot.slane %v388, 3
    %v395 = vrot.slane %v389, 3
    %v396 = vsel %vm275, %v394, %v395
    %v397 = vrot.slane %v390, 3
    %v398 = vsel %vm275, %v395, %v397
    %v401 = vadd.f32 %v115, %v396
    %v402 = vadd.f32 %v116, %v398
    %s403 = sld [smem:[#allocation3 + $0x104]]
    %v404 = vstv %s403
    %v405 = vmul.f32 %v404, %v318
    %v406 = vmul.f32 %v404, %v319
    %v407 = vadd.f32 %v401, %v405
    %v408 = vadd.f32 %v402, %v406
    %s409 = sld [smem:[#allocation3 + $0x105]]
    %v410 = vstv %s409
    %v411 = vmul.f32 %v410, %v348
    %v412 = vmul.f32 %v410, %v349
    %v413 = vadd.f32 %v407, %v411
    %v414 = vadd.f32 %v408, %v412
    %v415 = vld [vmem:[#allocation11] sm:$0xf0]
    %v416 = vld [vmem:[#allocation11 + $0x8] sm:$0xf0]
    %v417 = vld [vmem:[#allocation11 + $0x20] sm:$0xf]
    %v418 = vld [vmem:[#allocation11 + $0x28] sm:$0xf]
    %vm423 = vcmask 1043456
    %v424 = vrot.slane %v415, 4
    %v425 = vrot.slane %v119, 4
    %v426 = vsel %vm423, %v424, %v425
    %v427 = vrot.slane %v416, 4
    %v428 = vrot.slane %v120, 4
    %v429 = vsel %vm423, %v427, %v428
    %v430 = vrot.slane %v417, 4
    %v431 = vsel %vm423, %v425, %v430
    %v432 = vrot.slane %v418, 4
    %v433 = vsel %vm423, %v428, %v432
    %438 = vrot.lane.b32.xlu0 %v426, 126
    %v439 = vpop.permute.xlu0 %438
    %440 = vrot.lane.b32.xlu0 %v431, 126
    %v441 = vpop.permute.xlu0 %440
    %442 = vrot.lane.b32.xlu0 %v429, 126
    %v443 = vpop.permute.xlu0 %442
    %444 = vrot.lane.b32.xlu0 %v433, 126
    %v445 = vpop.permute.xlu0 %444
    %v446 = vsel %vm225, %v439, %v443
    %v447 = vsel %vm225, %v441, %v445
    %448 = vrot.lane.b32.xlu0 %v426, 125
    %v449 = vpop.permute.xlu0 %448
    %450 = vrot.lane.b32.xlu0 %v431, 125
    %v451 = vpop.permute.xlu0 %450
    %452 = vrot.lane.b32.xlu0 %v429, 125
    %v453 = vpop.permute.xlu0 %452
    %454 = vrot.lane.b32.xlu0 %v433, 125
    %v455 = vpop.permute.xlu0 %454
    %v456 = vsel %vm85, %v449, %v453
    %v457 = vsel %vm85, %v451, %v455
    %458 = vrot.lane.b32.xlu0 %v426, 124
    %v459 = vpop.permute.xlu0 %458
    %460 = vrot.lane.b32.xlu0 %v431, 124
    %v461 = vpop.permute.xlu0 %460
    %462 = vrot.lane.b32.xlu0 %v429, 124
    %v463 = vpop.permute.xlu0 %462
    %464 = vrot.lane.b32.xlu0 %v433, 124
    %v465 = vpop.permute.xlu0 %464
    %v466 = vsel %vm246, %v459, %v463
    %v467 = vsel %vm246, %v461, %v465
    %s468 = sld [smem:[#allocation3 + $0x6]]
    %v469 = vstv %s468
    %v470 = vmul.f32 %v469, %v446
    %v471 = vmul.f32 %v469, %v447
    %v472 = vadd.f32 %v366, %v470
    %v473 = vadd.f32 %v367, %v471
    %s474 = sld [smem:[#allocation3 + $0x7]]
    %v475 = vstv %s474
    %v476 = vmul.f32 %v475, %v456
    %v477 = vmul.f32 %v475, %v457
    %v478 = vadd.f32 %v472, %v476
    %v479 = vadd.f32 %v473, %v477
    %s480 = sld [smem:[#allocation3 + $0x8]]
    %v481 = vstv %s480
    %v482 = vmul.f32 %v481, %v466
    %v483 = vmul.f32 %v481, %v467
    %v484 = vadd.f32 %v478, %v482
    %v485 = vadd.f32 %v479, %v483
    %v486 = vld [vmem:[#allocation11] sm:$0xe0]
    %v487 = vld [vmem:[#allocation11 + $0x8] sm:$0xe0]
    %v488 = vld [vmem:[#allocation11 + $0x20] sm:$0x1f]
    %v489 = vld [vmem:[#allocation11 + $0x28] sm:$0x1f]
    %vm494 = vcmask 1042432
    %v495 = vrot.slane %v486, 5
    %v496 = vrot.slane %v119, 5
    %v497 = vsel %vm494, %v495, %v496
    %v498 = vrot.slane %v487, 5
    %v499 = vrot.slane %v120, 5
    %v500 = vsel %vm494, %v498, %v499
    %v501 = vrot.slane %v488, 5
    %v502 = vsel %vm494, %v496, %v501
    %v503 = vrot.slane %v489, 5
    %v504 = vsel %vm494, %v499, %v503
    %509 = vrot.lane.b32.xlu0 %v497, 127
    %v510 = vpop.permute.xlu0 %509
    %511 = vrot.lane.b32.xlu0 %v502, 127
    %v512 = vpop.permute.xlu0 %511
    %513 = vrot.lane.b32.xlu0 %v500, 127
    %v514 = vpop.permute.xlu0 %513
    %515 = vrot.lane.b32.xlu0 %v504, 127
    %v516 = vpop.permute.xlu0 %515
    %v517 = vsel %vm152, %v510, %v514
    %v518 = vsel %vm152, %v512, %v516
    %519 = vrot.lane.b32.xlu0 %v497, 125
    %v520 = vpop.permute.xlu0 %519
    %521 = vrot.lane.b32.xlu0 %v502, 125
    %v522 = vpop.permute.xlu0 %521
    %523 = vrot.lane.b32.xlu0 %v500, 125
    %v524 = vpop.permute.xlu0 %523
    %525 = vrot.lane.b32.xlu0 %v504, 125
    %v526 = vpop.permute.xlu0 %525
    %v527 = vsel %vm85, %v520, %v524
    %v528 = vsel %vm85, %v522, %v526
    %529 = vrot.lane.b32.xlu0 %v497, 123
    %v530 = vpop.permute.xlu0 %529
    %531 = vrot.lane.b32.xlu0 %v502, 123
    %v532 = vpop.permute.xlu0 %531
    %533 = vrot.lane.b32.xlu0 %v500, 123
    %v534 = vpop.permute.xlu0 %533
    %535 = vrot.lane.b32.xlu0 %v504, 123
    %v536 = vpop.permute.xlu0 %535
    %v537 = vsel %vm173, %v530, %v534
    %v538 = vsel %vm173, %v532, %v536
    %s539 = sld [smem:[#allocation3 + $0x86]]
    %v540 = vstv %s539
    %v541 = vmul.f32 %v540, %v517
    %v542 = vmul.f32 %v540, %v518
    %v543 = vadd.f32 %v384, %v541
    %v544 = vadd.f32 %v385, %v542
    %s545 = sld [smem:[#allocation3 + $0x87]]
    %v546 = vstv %s545
    %v547 = vmul.f32 %v546, %v527
    %v548 = vmul.f32 %v546, %v528
    %v549 = vadd.f32 %v543, %v547
    %v550 = vadd.f32 %v544, %v548
    %s551 = sld [smem:[#allocation3 + $0x88]]
    %v552 = vstv %s551
    %v553 = vmul.f32 %v552, %v537
    %v554 = vmul.f32 %v552, %v538
    %v555 = vadd.f32 %v549, %v553
    %v556 = vadd.f32 %v550, %v554
    %v557 = vld [vmem:[#allocation11] sm:$0xc0]
    %v558 = vld [vmem:[#allocation11 + $0x8] sm:$0xc0]
    %v559 = vld [vmem:[#allocation11 + $0x20] sm:$0x3f]
    %v560 = vld [vmem:[#allocation11 + $0x28] sm:$0x3f]
    %vm565 = vcmask 1041408
    %v566 = vrot.slane %v557, 6
    %v567 = vrot.slane %v119, 6
    %v568 = vsel %vm565, %v566, %v567
    %v569 = vrot.slane %v558, 6
    %v570 = vrot.slane %v120, 6
    %v571 = vsel %vm565, %v569, %v570
    %v572 = vrot.slane %v559, 6
    %v573 = vsel %vm565, %v567, %v572
    %v574 = vrot.slane %v560, 6
    %v575 = vsel %vm565, %v570, %v574
    %580 = vrot.lane.b32.xlu0 %v568, 125
    %v581 = vpop.permute.xlu0 %580
    %582 = vrot.lane.b32.xlu0 %v573, 125
    %v583 = vpop.permute.xlu0 %582
    %584 = vrot.lane.b32.xlu0 %v571, 125
    %v585 = vpop.permute.xlu0 %584
    %586 = vrot.lane.b32.xlu0 %v575, 125
    %v587 = vpop.permute.xlu0 %586
    %v588 = vsel %vm85, %v581, %v585
    %v589 = vsel %vm85, %v583, %v587
    %590 = vrot.lane.b32.xlu0 %v568, 122
    %v591 = vpop.permute.xlu0 %590
    %592 = vrot.lane.b32.xlu0 %v573, 122
    %v593 = vpop.permute.xlu0 %592
    %594 = vrot.lane.b32.xlu0 %v571, 122
    %v595 = vpop.permute.xlu0 %594
    %596 = vrot.lane.b32.xlu0 %v575, 122
    %v597 = vpop.permute.xlu0 %596
    %v598 = vsel %vm96, %v591, %v595
    %v599 = vsel %vm96, %v593, %v597
    %s600 = sld [smem:[#allocation3 + $0x106]]
    %v601 = vstv %s600
    %v602 = vmul.f32 %v601, %v557
    %v603 = vmul.f32 %v601, %v119
    %v604 = vmul.f32 %v601, %v559
    %v608 = vrot.slane %v602, 6
    %v609 = vrot.slane %v603, 6
    %v610 = vsel %vm565, %v608, %v609
    %v611 = vrot.slane %v604, 6
    %v612 = vsel %vm565, %v609, %v611
    %v615 = vadd.f32 %v413, %v610
    %v616 = vadd.f32 %v414, %v612
    %s617 = sld [smem:[#allocation3 + $0x107]]
    %v618 = vstv %s617
    %v619 = vmul.f32 %v618, %v588
    %v620 = vmul.f32 %v618, %v589
    %v621 = vadd.f32 %v615, %v619
    %v622 = vadd.f32 %v616, %v620
    %s623 = sld [smem:[#allocation3 + $0x108]]
    %v624 = vstv %s623
    %v625 = vmul.f32 %v624, %v598
    %v626 = vmul.f32 %v624, %v599
    %v627 = vadd.f32 %v621, %v625
    %v628 = vadd.f32 %v622, %v626
    %s629 = sld [smem:[#allocation8]]
    %v630 = vstv %s629
    %v631 = vadd.f32 %v484, %v630
    %v632 = vadd.f32 %v485, %v630
    %v633 = vmax.f32 %v631, 0.0
    %v634 = vmax.f32 %v632, 0.0
    %s635 = sld [smem:[#allocation9]]
    %v636 = vstv %s635
    %v637 = vmul.f32 %v633, %v636
    %v638 = vmul.f32 %v634, %v636
    %v639 = vadd.f32 %v637, 0.0
    %v640 = vadd.f32 %v638, 0.0
    %s641 = sld [smem:[#allocation8 + $0x1]]
    %v642 = vstv %s641
    %v643 = vadd.f32 %v555, %v642
    %v644 = vadd.f32 %v556, %v642
    %v645 = vmax.f32 %v643, 0.0
    %v646 = vmax.f32 %v644, 0.0
    %s647 = sld [smem:[#allocation9 + $0x1]]
    %v648 = vstv %s647
    %v649 = vmul.f32 %v645, %v648
    %v650 = vmul.f32 %v646, %v648
    %v651 = vadd.f32 %v639, %v649
    %v652 = vadd.f32 %v640, %v650
    %s653 = sld [smem:[#allocation8 + $0x2]]
    %v654 = vstv %s653
    %v655 = vadd.f32 %v627, %v654
    %v656 = vadd.f32 %v628, %v654
    %v657 = vmax.f32 %v655, 0.0
    %v658 = vmax.f32 %v656, 0.0
    %s659 = sld [smem:[#allocation9 + $0x2]]
    %v660 = vstv %s659
    %v661 = vmul.f32 %v657, %v660
    %v662 = vmul.f32 %v658, %v660
    %v663 = vadd.f32 %v651, %v661
    %v664 = vadd.f32 %v652, %v662
    %s665 = sld [smem:[#allocation2]]
    %v666 = vstv %s665
    %v667 = vadd.f32 %v663, %v666
    %v668 = vadd.f32 %v664, %v666
    %v669 = vmax.f32 %v667, 0.0
    %v670 = vmax.f32 %v668, 0.0
    %671 = vst [vmem:[#allocation12] sm:$0xff] %v669
    %672 = vst [vmem:[#allocation12 + $0x8] sm:$0xff] %v670
    %s673 = scalar_lea.vmem [#allocation11], 48
    %v674 = vld [vmem:[%s673] sm:$0xff]
    %v675 = vld [vmem:[%s673 + $0x8] sm:$0xff]
    %v676 = vld [vmem:[%s673 + $0x10] sm:$0xff]
    %v677 = vld [vmem:[%s673 + $0x18] sm:$0xff]
    %678 = vrot.lane.b32.xlu0 %v674, 125
    %v679 = vpop.permute.xlu0 %678
    %680 = vrot.lane.b32.xlu0 %v676, 125
    %v681 = vpop.permute.xlu0 %680
    %682 = vrot.lane.b32.xlu0 %v675, 125
    %v683 = vpop.permute.xlu0 %682
    %684 = vrot.lane.b32.xlu0 %v677, 125
    %v685 = vpop.permute.xlu0 %684
    %v686 = vsel %vm85, %v679, %v683
    %v687 = vsel %vm85, %v681, %v685
    %688 = vrot.lane.b32.xlu0 %v674, 122
    %v689 = vpop.permute.xlu0 %688
    %690 = vrot.lane.b32.xlu0 %v676, 122
    %v691 = vpop.permute.xlu0 %690
    %692 = vrot.lane.b32.xlu0 %v675, 122
    %v693 = vpop.permute.xlu0 %692
    %694 = vrot.lane.b32.xlu0 %v677, 122
    %v695 = vpop.permute.xlu0 %694
    %v696 = vsel %vm96, %v689, %v693
    %v697 = vsel %vm96, %v691, %v695
    %s698 = sld [smem:[#allocation3 + $0x100]]
    %v699 = vstv %s698
    %v700 = vmul.f32 %v699, %v674
    %v701 = vmul.f32 %v699, %v676
    %v702 = vadd.f32 %v700, 0.0
    %v703 = vadd.f32 %v701, 0.0
    %s704 = sld [smem:[#allocation3 + $0x101]]
    %v705 = vstv %s704
    %v706 = vmul.f32 %v705, %v686
    %v707 = vmul.f32 %v705, %v687
    %v708 = vadd.f32 %v702, %v706
    %v709 = vadd.f32 %v703, %v707
    %s710 = sld [smem:[#allocation3 + $0x102]]
    %v711 = vstv %s710
    %v712 = vmul.f32 %v711, %v696
    %v713 = vmul.f32 %v711, %v697
    %v714 = vadd.f32 %v708, %v712
    %v715 = vadd.f32 %v709, %v713
    %v716 = vld [vmem:[%s673] sm:$0xfe]
    %v717 = vld [vmem:[%s673 + $0x8] sm:$0xfe]
    %v718 = vld [vmem:[%s673 + $0x10] sm:$0xff]
    %v719 = vld [vmem:[%s673 + $0x18] sm:$0xff]
    %v720 = vld [vmem:[%s673 + $0x20] sm:$0x1]
    %v721 = vld [vmem:[%s673 + $0x28] sm:$0x1]
    %v728 = vrot.slane %v716, 1
    %v729 = vrot.slane %v718, 1
    %v730 = vsel %vm129, %v728, %v729
    %v731 = vrot.slane %v717, 1
    %v732 = vrot.slane %v719, 1
    %v733 = vsel %vm129, %v731, %v732
    %v734 = vrot.slane %v720, 1
    %v735 = vsel %vm129, %v729, %v734
    %v736 = vrot.slane %v721, 1
    %v737 = vsel %vm129, %v732, %v736
    %742 = vrot.lane.b32.xlu0 %v730, 127
    %v743 = vpop.permute.xlu0 %742
    %744 = vrot.lane.b32.xlu0 %v735, 127
    %v745 = vpop.permute.xlu0 %744
    %746 = vrot.lane.b32.xlu0 %v733, 127
    %v747 = vpop.permute.xlu0 %746
    %748 = vrot.lane.b32.xlu0 %v737, 127
    %v749 = vpop.permute.xlu0 %748
    %v750 = vsel %vm152, %v743, %v747
    %v751 = vsel %vm152, %v745, %v749
    %752 = vrot.lane.b32.xlu0 %v730, 125
    %v753 = vpop.permute.xlu0 %752
    %754 = vrot.lane.b32.xlu0 %v735, 125
    %v755 = vpop.permute.xlu0 %754
    %756 = vrot.lane.b32.xlu0 %v733, 125
    %v757 = vpop.permute.xlu0 %756
    %758 = vrot.lane.b32.xlu0 %v737, 125
    %v759 = vpop.permute.xlu0 %758
    %v760 = vsel %vm85, %v753, %v757
    %v761 = vsel %vm85, %v755, %v759
    %762 = vrot.lane.b32.xlu0 %v730, 123
    %v763 = vpop.permute.xlu0 %762
    %764 = vrot.lane.b32.xlu0 %v735, 123
    %v765 = vpop.permute.xlu0 %764
    %766 = vrot.lane.b32.xlu0 %v733, 123
    %v767 = vpop.permute.xlu0 %766
    %768 = vrot.lane.b32.xlu0 %v737, 123
    %v769 = vpop.permute.xlu0 %768
    %v770 = vsel %vm173, %v763, %v767
    %v771 = vsel %vm173, %v765, %v769
    %s772 = sld [smem:[#allocation3 + $0x80]]
    %v773 = vstv %s772
    %v774 = vmul.f32 %v773, %v750
    %v775 = vmul.f32 %v773, %v751
    %v776 = vadd.f32 %v774, 0.0
    %v777 = vadd.f32 %v775, 0.0
    %s778 = sld [smem:[#allocation3 + $0x81]]
    %v779 = vstv %s778
    %v780 = vmul.f32 %v779, %v760
    %v781 = vmul.f32 %v779, %v761
    %v782 = vadd.f32 %v776, %v780
    %v783 = vadd.f32 %v777, %v781
    %s784 = sld [smem:[#allocation3 + $0x82]]
    %v785 = vstv %s784
    %v786 = vmul.f32 %v785, %v770
    %v787 = vmul.f32 %v785, %v771
    %v788 = vadd.f32 %v782, %v786
    %v789 = vadd.f32 %v783, %v787
    %v790 = vld [vmem:[%s673] sm:$0xfc]
    %v791 = vld [vmem:[%s673 + $0x8] sm:$0xfc]
    %v792 = vld [vmem:[%s673 + $0x20] sm:$0x3]
    %v793 = vld [vmem:[%s673 + $0x28] sm:$0x3]
    %v798 = vrot.slane %v790, 2
    %v799 = vrot.slane %v718, 2
    %v800 = vsel %vm202, %v798, %v799
    %v801 = vrot.slane %v791, 2
    %v802 = vrot.slane %v719, 2
    %v803 = vsel %vm202, %v801, %v802
    %v804 = vrot.slane %v792, 2
    %v805 = vsel %vm202, %v799, %v804
    %v806 = vrot.slane %v793, 2
    %v807 = vsel %vm202, %v802, %v806
    %812 = vrot.lane.b32.xlu0 %v800, 126
    %v813 = vpop.permute.xlu0 %812
    %814 = vrot.lane.b32.xlu0 %v805, 126
    %v815 = vpop.permute.xlu0 %814
    %816 = vrot.lane.b32.xlu0 %v803, 126
    %v817 = vpop.permute.xlu0 %816
    %818 = vrot.lane.b32.xlu0 %v807, 126
    %v819 = vpop.permute.xlu0 %818
    %v820 = vsel %vm225, %v813, %v817
    %v821 = vsel %vm225, %v815, %v819
    %822 = vrot.lane.b32.xlu0 %v800, 125
    %v823 = vpop.permute.xlu0 %822
    %824 = vrot.lane.b32.xlu0 %v805, 125
    %v825 = vpop.permute.xlu0 %824
    %826 = vrot.lane.b32.xlu0 %v803, 125
    %v827 = vpop.permute.xlu0 %826
    %828 = vrot.lane.b32.xlu0 %v807, 125
    %v829 = vpop.permute.xlu0 %828
    %v830 = vsel %vm85, %v823, %v827
    %v831 = vsel %vm85, %v825, %v829
    %832 = vrot.lane.b32.xlu0 %v800, 124
    %v833 = vpop.permute.xlu0 %832
    %834 = vrot.lane.b32.xlu0 %v805, 124
    %v835 = vpop.permute.xlu0 %834
    %836 = vrot.lane.b32.xlu0 %v803, 124
    %v837 = vpop.permute.xlu0 %836
    %838 = vrot.lane.b32.xlu0 %v807, 124
    %v839 = vpop.permute.xlu0 %838
    %v840 = vsel %vm246, %v833, %v837
    %v841 = vsel %vm246, %v835, %v839
    %s842 = sld [smem:[#allocation3]]
    %v843 = vstv %s842
    %v844 = vmul.f32 %v843, %v820
    %v845 = vmul.f32 %v843, %v821
    %v846 = vadd.f32 %v844, 0.0
    %v847 = vadd.f32 %v845, 0.0
    %s848 = sld [smem:[#allocation3 + $0x1]]
    %v849 = vstv %s848
    %v850 = vmul.f32 %v849, %v830
    %v851 = vmul.f32 %v849, %v831
    %v852 = vadd.f32 %v846, %v850
    %v853 = vadd.f32 %v847, %v851
    %s854 = sld [smem:[#allocation3 + $0x2]]
    %v855 = vstv %s854
    %v856 = vmul.f32 %v855, %v840
    %v857 = vmul.f32 %v855, %v841
    %v858 = vadd.f32 %v852, %v856
    %v859 = vadd.f32 %v853, %v857
    %v860 = vld [vmem:[%s673] sm:$0xf8]
    %v861 = vld [vmem:[%s673 + $0x8] sm:$0xf8]
    %v862 = vld [vmem:[%s673 + $0x20] sm:$0x7]
    %v863 = vld [vmem:[%s673 + $0x28] sm:$0x7]
    %v868 = vrot.slane %v860, 3
    %v869 = vrot.slane %v718, 3
    %v870 = vsel %vm275, %v868, %v869
    %v871 = vrot.slane %v861, 3
    %v872 = vrot.slane %v719, 3
    %v873 = vsel %vm275, %v871, %v872
    %v874 = vrot.slane %v862, 3
    %v875 = vsel %vm275, %v869, %v874
    %v876 = vrot.slane %v863, 3
    %v877 = vsel %vm275, %v872, %v876
    %882 = vrot.lane.b32.xlu0 %v870, 127
    %v883 = vpop.permute.xlu0 %882
    %884 = vrot.lane.b32.xlu0 %v875, 127
    %v885 = vpop.permute.xlu0 %884
    %886 = vrot.lane.b32.xlu0 %v873, 127
    %v887 = vpop.permute.xlu0 %886
    %888 = vrot.lane.b32.xlu0 %v877, 127
    %v889 = vpop.permute.xlu0 %888
    %v890 = vsel %vm152, %v883, %v887
    %v891 = vsel %vm152, %v885, %v889
    %892 = vrot.lane.b32.xlu0 %v870, 126
    %v893 = vpop.permute.xlu0 %892
    %894 = vrot.lane.b32.xlu0 %v875, 126
    %v895 = vpop.permute.xlu0 %894
    %896 = vrot.lane.b32.xlu0 %v873, 126
    %v897 = vpop.permute.xlu0 %896
    %898 = vrot.lane.b32.xlu0 %v877, 126
    %v899 = vpop.permute.xlu0 %898
    %v900 = vsel %vm225, %v893, %v897
    %v901 = vsel %vm225, %v895, %v899
    %902 = vrot.lane.b32.xlu0 %v870, 125
    %v903 = vpop.permute.xlu0 %902
    %904 = vrot.lane.b32.xlu0 %v875, 125
    %v905 = vpop.permute.xlu0 %904
    %906 = vrot.lane.b32.xlu0 %v873, 125
    %v907 = vpop.permute.xlu0 %906
    %908 = vrot.lane.b32.xlu0 %v877, 125
    %v909 = vpop.permute.xlu0 %908
    %v910 = vsel %vm85, %v903, %v907
    %v911 = vsel %vm85, %v905, %v909
    %912 = vrot.lane.b32.xlu0 %v870, 124
    %v913 = vpop.permute.xlu0 %912
    %914 = vrot.lane.b32.xlu0 %v875, 124
    %v915 = vpop.permute.xlu0 %914
    %916 = vrot.lane.b32.xlu0 %v873, 124
    %v917 = vpop.permute.xlu0 %916
    %918 = vrot.lane.b32.xlu0 %v877, 124
    %v919 = vpop.permute.xlu0 %918
    %v920 = vsel %vm246, %v913, %v917
    %v921 = vsel %vm246, %v915, %v919
    %922 = vrot.lane.b32.xlu0 %v870, 123
    %v923 = vpop.permute.xlu0 %922
    %924 = vrot.lane.b32.xlu0 %v875, 123
    %v925 = vpop.permute.xlu0 %924
    %926 = vrot.lane.b32.xlu0 %v873, 123
    %v927 = vpop.permute.xlu0 %926
    %928 = vrot.lane.b32.xlu0 %v877, 123
    %v929 = vpop.permute.xlu0 %928
    %v930 = vsel %vm173, %v923, %v927
    %v931 = vsel %vm173, %v925, %v929
    %932 = vrot.lane.b32.xlu0 %v870, 122
    %v933 = vpop.permute.xlu0 %932
    %934 = vrot.lane.b32.xlu0 %v875, 122
    %v935 = vpop.permute.xlu0 %934
    %936 = vrot.lane.b32.xlu0 %v873, 122
    %v937 = vpop.permute.xlu0 %936
    %938 = vrot.lane.b32.xlu0 %v877, 122
    %v939 = vpop.permute.xlu0 %938
    %v940 = vsel %vm96, %v933, %v937
    %v941 = vsel %vm96, %v935, %v939
    %s942 = sld [smem:[#allocation3 + $0x3]]
    %v943 = vstv %s942
    %v944 = vmul.f32 %v943, %v900
    %v945 = vmul.f32 %v943, %v901
    %v946 = vadd.f32 %v858, %v944
    %v947 = vadd.f32 %v859, %v945
    %s948 = sld [smem:[#allocation3 + $0x4]]
    %v949 = vstv %s948
    %v950 = vmul.f32 %v949, %v910
    %v951 = vmul.f32 %v949, %v911
    %v952 = vadd.f32 %v946, %v950
    %v953 = vadd.f32 %v947, %v951
    %s954 = sld [smem:[#allocation3 + $0x5]]
    %v955 = vstv %s954
    %v956 = vmul.f32 %v955, %v920
    %v957 = vmul.f32 %v955, %v921
    %v958 = vadd.f32 %v952, %v956
    %v959 = vadd.f32 %v953, %v957
    %s960 = sld [smem:[#allocation3 + $0x83]]
    %v961 = vstv %s960
    %v962 = vmul.f32 %v961, %v890
    %v963 = vmul.f32 %v961, %v891
    %v964 = vadd.f32 %v788, %v962
    %v965 = vadd.f32 %v789, %v963
    %s966 = sld [smem:[#allocation3 + $0x84]]
    %v967 = vstv %s966
    %v968 = vmul.f32 %v967, %v910
    %v969 = vmul.f32 %v967, %v911
    %v970 = vadd.f32 %v964, %v968
    %v971 = vadd.f32 %v965, %v969
    %s972 = sld [smem:[#allocation3 + $0x85]]
    %v973 = vstv %s972
    %v974 = vmul.f32 %v973, %v930
    %v975 = vmul.f32 %v973, %v931
    %v976 = vadd.f32 %v970, %v974
    %v977 = vadd.f32 %v971, %v975
    %s978 = sld [smem:[#allocation3 + $0x103]]
    %v979 = vstv %s978
    %v980 = vmul.f32 %v979, %v860
    %v981 = vmul.f32 %v979, %v718
    %v982 = vmul.f32 %v979, %v862
    %v986 = vrot.slane %v980, 3
    %v987 = vrot.slane %v981, 3
    %v988 = vsel %vm275, %v986, %v987
    %v989 = vrot.slane %v982, 3
    %v990 = vsel %vm275, %v987, %v989
    %v993 = vadd.f32 %v714, %v988
    %v994 = vadd.f32 %v715, %v990
    %s995 = sld [smem:[#allocation3 + $0x104]]
    %v996 = vstv %s995
    %v997 = vmul.f32 %v996, %v910
    %v998 = vmul.f32 %v996, %v911
    %v999 = vadd.f32 %v993, %v997
    %v1000 = vadd.f32 %v994, %v998
    %s1001 = sld [smem:[#allocation3 + $0x105]]
    %v1002 = vstv %s1001
    %v1003 = vmul.f32 %v1002, %v940
    %v1004 = vmul.f32 %v1002, %v941
    %v1005 = vadd.f32 %v999, %v1003
    %v1006 = vadd.f32 %v1000, %v1004
    %v1007 = vld [vmem:[%s673] sm:$0xf0]
    %v1008 = vld [vmem:[%s673 + $0x8] sm:$0xf0]
    %v1009 = vld [vmem:[%s673 + $0x20] sm:$0xf]
    %v1010 = vld [vmem:[%s673 + $0x28] sm:$0xf]
    %v1015 = vrot.slane %v1007, 4
    %v1016 = vrot.slane %v718, 4
    %v1017 = vsel %vm423, %v1015, %v1016
    %v1018 = vrot.slane %v1008, 4
    %v1019 = vrot.slane %v719, 4
    %v1020 = vsel %vm423, %v1018, %v1019
    %v1021 = vrot.slane %v1009, 4
    %v1022 = vsel %vm423, %v1016, %v1021
    %v1023 = vrot.slane %v1010, 4
    %v1024 = vsel %vm423, %v1019, %v1023
    %1029 = vrot.lane.b32.xlu0 %v1017, 126
    %v1030 = vpop.permute.xlu0 %1029
    %1031 = vrot.lane.b32.xlu0 %v1022, 126
    %v1032 = vpop.permute.xlu0 %1031
    %1033 = vrot.lane.b32.xlu0 %v1020, 126
    %v1034 = vpop.permute.xlu0 %1033
    %1035 = vrot.lane.b32.xlu0 %v1024, 126
    %v1036 = vpop.permute.xlu0 %1035
    %v1037 = vsel %vm225, %v1030, %v1034
    %v1038 = vsel %vm225, %v1032, %v1036
    %1039 = vrot.lane.b32.xlu0 %v1017, 125
    %v1040 = vpop.permute.xlu0 %1039
    %1041 = vrot.lane.b32.xlu0 %v1022, 125
    %v1042 = vpop.permute.xlu0 %1041
    %1043 = vrot.lane.b32.xlu0 %v1020, 125
    %v1044 = vpop.permute.xlu0 %1043
    %1045 = vrot.lane.b32.xlu0 %v1024, 125
    %v1046 = vpop.permute.xlu0 %1045
    %v1047 = vsel %vm85, %v1040, %v1044
    %v1048 = vsel %vm85, %v1042, %v1046
    %1049 = vrot.lane.b32.xlu0 %v1017, 124
    %v1050 = vpop.permute.xlu0 %1049
    %1051 = vrot.lane.b32.xlu0 %v1022, 124
    %v1052 = vpop.permute.xlu0 %1051
    %1053 = vrot.lane.b32.xlu0 %v1020, 124
    %v1054 = vpop.permute.xlu0 %1053
    %1055 = vrot.lane.b32.xlu0 %v1024, 124
    %v1056 = vpop.permute.xlu0 %1055
    %v1057 = vsel %vm246, %v1050, %v1054
    %v1058 = vsel %vm246, %v1052, %v1056
    %s1059 = sld [smem:[#allocation3 + $0x6]]
    %v1060 = vstv %s1059
    %v1061 = vmul.f32 %v1060, %v1037
    %v1062 = vmul.f32 %v1060, %v1038
    %v1063 = vadd.f32 %v958, %v1061
    %v1064 = vadd.f32 %v959, %v1062
    %s1065 = sld [smem:[#allocation3 + $0x7]]
    %v1066 = vstv %s1065
    %v1067 = vmul.f32 %v1066, %v1047
    %v1068 = vmul.f32 %v1066, %v1048
    %v1069 = vadd.f32 %v1063, %v1067
    %v1070 = vadd.f32 %v1064, %v1068
    %s1071 = sld [smem:[#allocation3 + $0x8]]
    %v1072 = vstv %s1071
    %v1073 = vmul.f32 %v1072, %v1057
    %v1074 = vmul.f32 %v1072, %v1058
    %v1075 = vadd.f32 %v1069, %v1073
    %v1076 = vadd.f32 %v1070, %v1074
    %v1077 = vld [vmem:[%s673] sm:$0xe0]
    %v1078 = vld [vmem:[%s673 + $0x8] sm:$0xe0]
    %v1079 = vld [vmem:[%s673 + $0x20] sm:$0x1f]
    %v1080 = vld [vmem:[%s673 + $0x28] sm:$0x1f]
    %v1085 = vrot.slane %v1077, 5
    %v1086 = vrot.slane %v718, 5
    %v1087 = vsel %vm494, %v1085, %v1086
    %v1088 = vrot.slane %v1078, 5
    %v1089 = vrot.slane %v719, 5
    %v1090 = vsel %vm494, %v1088, %v1089
    %v1091 = vrot.slane %v1079, 5
    %v1092 = vsel %vm494, %v1086, %v1091
    %v1093 = vrot.slane %v1080, 5
    %v1094 = vsel %vm494, %v1089, %v1093
    %1099 = vrot.lane.b32.xlu0 %v1087, 127
    %v1100 = vpop.permute.xlu0 %1099
    %1101 = vrot.lane.b32.xlu0 %v1092, 127
    %v1102 = vpop.permute.xlu0 %1101
    %1103 = vrot.lane.b32.xlu0 %v1090, 127
    %v1104 = vpop.permute.xlu0 %1103
    %1105 = vrot.lane.b32.xlu0 %v1094, 127
    %v1106 = vpop.permute.xlu0 %1105
    %v1107 = vsel %vm152, %v1100, %v1104
    %v1108 = vsel %vm152, %v1102, %v1106
    %1109 = vrot.lane.b32.xlu0 %v1087, 125
    %v1110 = vpop.permute.xlu0 %1109
    %1111 = vrot.lane.b32.xlu0 %v1092, 125
    %v1112 = vpop.permute.xlu0 %1111
    %1113 = vrot.lane.b32.xlu0 %v1090, 125
    %v1114 = vpop.permute.xlu0 %1113
    %1115 = vrot.lane.b32.xlu0 %v1094, 125
    %v1116 = vpop.permute.xlu0 %1115
    %v1117 = vsel %vm85, %v1110, %v1114
    %v1118 = vsel %vm85, %v1112, %v1116
    %1119 = vrot.lane.b32.xlu0 %v1087, 123
    %v1120 = vpop.permute.xlu0 %1119
    %1121 = vrot.lane.b32.xlu0 %v1092, 123
    %v1122 = vpop.permute.xlu0 %1121
    %1123 = vrot.lane.b32.xlu0 %v1090, 123
    %v1124 = vpop.permute.xlu0 %1123
    %1125 = vrot.lane.b32.xlu0 %v1094, 123
    %v1126 = vpop.permute.xlu0 %1125
    %v1127 = vsel %vm173, %v1120, %v1124
    %v1128 = vsel %vm173, %v1122, %v1126
    %s1129 = sld [smem:[#allocation3 + $0x86]]
    %v1130 = vstv %s1129
    %v1131 = vmul.f32 %v1130, %v1107
    %v1132 = vmul.f32 %v1130, %v1108
    %v1133 = vadd.f32 %v976, %v1131
    %v1134 = vadd.f32 %v977, %v1132
    %s1135 = sld [smem:[#allocation3 + $0x87]]
    %v1136 = vstv %s1135
    %v1137 = vmul.f32 %v1136, %v1117
    %v1138 = vmul.f32 %v1136, %v1118
    %v1139 = vadd.f32 %v1133, %v1137
    %v1140 = vadd.f32 %v1134, %v1138
    %s1141 = sld [smem:[#allocation3 + $0x88]]
    %v1142 = vstv %s1141
    %v1143 = vmul.f32 %v1142, %v1127
    %v1144 = vmul.f32 %v1142, %v1128
    %v1145 = vadd.f32 %v1139, %v1143
    %v1146 = vadd.f32 %v1140, %v1144
    %v1147 = vld [vmem:[%s673] sm:$0xc0]
    %v1148 = vld [vmem:[%s673 + $0x8] sm:$0xc0]
    %v1149 = vld [vmem:[%s673 + $0x20] sm:$0x3f]
    %v1150 = vld [vmem:[%s673 + $0x28] sm:$0x3f]
    %v1155 = vrot.slane %v1147, 6
    %v1156 = vrot.slane %v718, 6
    %v1157 = vsel %vm565, %v1155, %v1156
    %v1158 = vrot.slane %v1148, 6
    %v1159 = vrot.slane %v719, 6
    %v1160 = vsel %vm565, %v1158, %v1159
    %v1161 = vrot.slane %v1149, 6
    %v1162 = vsel %vm565, %v1156, %v1161
    %v1163 = vrot.slane %v1150, 6
    %v1164 = vsel %vm565, %v1159, %v1163
    %1169 = vrot.lane.b32.xlu0 %v1157, 125
    %v1170 = vpop.permute.xlu0 %1169
    %1171 = vrot.lane.b32.xlu0 %v1162, 125
    %v1172 = vpop.permute.xlu0 %1171
    %1173 = vrot.lane.b32.xlu0 %v1160, 125
    %v1174 = vpop.permute.xlu0 %1173
    %1175 = vrot.lane.b32.xlu0 %v1164, 125
    %v1176 = vpop.permute.xlu0 %1175
    %v1177 = vsel %vm85, %v1170, %v1174
    %v1178 = vsel %vm85, %v1172, %v1176
    %1179 = vrot.lane.b32.xlu0 %v1157, 122
    %v1180 = vpop.permute.xlu0 %1179
    %1181 = vrot.lane.b32.xlu0 %v1162, 122
    %v1182 = vpop.permute.xlu0 %1181
    %1183 = vrot.lane.b32.xlu0 %v1160, 122
    %v1184 = vpop.permute.xlu0 %1183
    %1185 = vrot.lane.b32.xlu0 %v1164, 122
    %v1186 = vpop.permute.xlu0 %1185
    %v1187 = vsel %vm96, %v1180, %v1184
    %v1188 = vsel %vm96, %v1182, %v1186
    %s1189 = sld [smem:[#allocation3 + $0x106]]
    %v1190 = vstv %s1189
    %v1191 = vmul.f32 %v1190, %v1147
    %v1192 = vmul.f32 %v1190, %v718
    %v1193 = vmul.f32 %v1190, %v1149
    %v1197 = vrot.slane %v1191, 6
    %v1198 = vrot.slane %v1192, 6
    %v1199 = vsel %vm565, %v1197, %v1198
    %v1200 = vrot.slane %v1193, 6
    %v1201 = vsel %vm565, %v1198, %v1200
    %v1204 = vadd.f32 %v1005, %v1199
    %v1205 = vadd.f32 %v1006, %v1201
    %s1206 = sld [smem:[#allocation3 + $0x107]]
    %v1207 = vstv %s1206
    %v1208 = vmul.f32 %v1207, %v1177
    %v1209 = vmul.f32 %v1207, %v1178
    %v1210 = vadd.f32 %v1204, %v1208
    %v1211 = vadd.f32 %v1205, %v1209
    %s1212 = sld [smem:[#allocation3 + $0x108]]
    %v1213 = vstv %s1212
    %v1214 = vmul.f32 %v1213, %v1187
    %v1215 = vmul.f32 %v1213, %v1188
    %v1216 = vadd.f32 %v1210, %v1214
    %v1217 = vadd.f32 %v1211, %v1215
    %s1218 = sld [smem:[#allocation8]]
    %v1219 = vstv %s1218
    %v1220 = vadd.f32 %v1075, %v1219
    %v1221 = vadd.f32 %v1076, %v1219
    %v1222 = vmax.f32 %v1220, 0.0
    %v1223 = vmax.f32 %v1221, 0.0
    %s1224 = sld [smem:[#allocation9]]
    %v1225 = vstv %s1224
    %v1226 = vmul.f32 %v1222, %v1225
    %v1227 = vmul.f32 %v1223, %v1225
    %v1228 = vadd.f32 %v1226, 0.0
    %v1229 = vadd.f32 %v1227, 0.0
    %s1230 = sld [smem:[#allocation8 + $0x1]]
    %v1231 = vstv %s1230
    %v1232 = vadd.f32 %v1145, %v1231
    %v1233 = vadd.f32 %v1146, %v1231
    %v1234 = vmax.f32 %v1232, 0.0
    %v1235 = vmax.f32 %v1233, 0.0
    %s1236 = sld [smem:[#allocation9 + $0x1]]
    %v1237 = vstv %s1236
    %v1238 = vmul.f32 %v1234, %v1237
    %v1239 = vmul.f32 %v1235, %v1237
    %v1240 = vadd.f32 %v1228, %v1238
    %v1241 = vadd.f32 %v1229, %v1239
    %s1242 = sld [smem:[#allocation8 + $0x2]]
    %v1243 = vstv %s1242
    %v1244 = vadd.f32 %v1216, %v1243
    %v1245 = vadd.f32 %v1217, %v1243
    %v1246 = vmax.f32 %v1244, 0.0
    %v1247 = vmax.f32 %v1245, 0.0
    %s1248 = sld [smem:[#allocation9 + $0x2]]
    %v1249 = vstv %s1248
    %v1250 = vmul.f32 %v1246, %v1249
    %v1251 = vmul.f32 %v1247, %v1249
    %v1252 = vadd.f32 %v1240, %v1250
    %v1253 = vadd.f32 %v1241, %v1251
    %s1254 = sld [smem:[#allocation2]]
    %v1255 = vstv %s1254
    %v1256 = vadd.f32 %v1252, %v1255
    %v1257 = vadd.f32 %v1253, %v1255
    %v1258 = vmax.f32 %v1256, 0.0
    %v1259 = vmax.f32 %v1257, 0.0
    %s1260 = scalar_lea.vmem [#allocation12], 16
    %1261 = vst [vmem:[%s1260] sm:$0xff] %v1258
    %1262 = vst [vmem:[%s1260 + $0x8] sm:$0xff] %v1259
    // Predicated region
    $region38: #{tpu_custom_call.1} parent=1 // pred_check
      _
    $region39: #{tpu_custom_call.1} parent=1 // pred_check_branch
      %1264 = sbr.rel (0) target = $region41
    $region40: #{tpu_custom_call.1} parent=1 // pred_region
      %s1266 = ssub.s32 512, 512
      %1267 = vsyncadd [#allocation5], %s1266
      %s1268 = sshll.u32 [#allocation12], 4
      %s1269 = int_to_ptr.vmem [resolvable:$true] %s1268
      %1274 = dma.vmem_to_hbm [thread:$0]  %s1269, 512, %s5, [#allocation5], 128, 128, 8
    $region41: #{tpu_custom_call.1} parent=1 // pred_fallthru
      _
    // Predicated region
    $region42: #{tpu_custom_call.1} parent=1 // pred_check
      _
    $region43: #{tpu_custom_call.1} parent=1 // pred_check_branch
      %1276 = sbr.rel (0) target = $region45
    $region44: #{tpu_custom_call.1} parent=1 // pred_region
      %1277 = dma.done [#allocation5], 512
    $region45: #{tpu_custom_call.1} parent=1 // pred_fallthru
      _
    %1278 = vsyncpa [#allocation4], 1
    %1279 = vsyncpa [#allocation5], 1
    %1280 = vsyncpa [#allocation6], 1
    %1281 = vsyncpa [#allocation7], 1
    %1282 = vsyncpa [#allocation10], 1

</llo_original>
